<compile_context>
chip_gen: v5e
topology: v5e:2x2
jax: 0.10.0
libtpu: 0.0.40
codegen_flags: <defaults>
</compile_context>

<pallas_src>
import functools

import jax
import jax.numpy as jnp
from jax.experimental import pallas as pl
from jax.experimental.pallas import tpu as pltpu


# ---------------------------------------------------------------------------
# Pallas kernels
# ---------------------------------------------------------------------------

def _matmul_bias_kernel(x_ref, w_ref, b_ref, o_ref, *, relu):
    """One (TILE_M, K) x (K, N) tile:  o = relu?(x @ w + b).  bf16 MXU, f32 acc."""
    x = x_ref[...].astype(jnp.bfloat16)
    acc = jnp.dot(x, w_ref[...], preferred_element_type=jnp.float32)
    acc = acc + b_ref[...]                       # b is (1, N), broadcasts over rows
    if relu:
        acc = jnp.maximum(acc, 0.0)
    o_ref[...] = acc.astype(o_ref.dtype)


def _fc_head_kernel(x_ref, w1_ref, b1_ref, w2_ref, b2_ref, o_ref):
    """Fused FC tail:  o = relu(x @ w1 + b1) @ w2 + b2   (single pallas_call)."""
    x = x_ref[...].astype(jnp.bfloat16)
    h = jnp.dot(x, w1_ref[...], preferred_element_type=jnp.float32)
    h = jnp.maximum(h + b1_ref[...], 0.0)
    o = jnp.dot(h.astype(jnp.bfloat16), w2_ref[...],
                preferred_element_type=jnp.float32)
    o_ref[...] = (o + b2_ref[...]).astype(o_ref.dtype)


# ---------------------------------------------------------------------------
# Tiling helpers
# ---------------------------------------------------------------------------

def _round_up(x, m):
    return ((x + m - 1) // m) * m


def _choose_tile_m(m):
    # >=256 keeps the 256-wide MXU (v6e/v7x) full and DMA blocks big; for tiny
    # M just round up to the sublane multiple (8).
    if m >= 256:
        return 256
    return max(8, _round_up(m, 8))


def _pad_rows(x, m_pad):
    m = x.shape[0]
    if m_pad == m:
        return x
    return jnp.pad(x, ((0, m_pad - m), (0, 0)))


def _vmem_limit(nbytes):
    return int(min(max(2 * nbytes, 16 << 20), 64 << 20))


# ---------------------------------------------------------------------------
# Pallas wrappers
# ---------------------------------------------------------------------------

def pallas_matmul_bias(x, w, b, *, relu):
    """x: (M, K) f32, w: (K, N) bf16, b: (1, N) f32 -> (M, N) f32."""
    m, k = x.shape
    n = w.shape[1]
    tile_m = _choose_tile_m(m)
    m_pad = _round_up(m, tile_m)
    xp = _pad_rows(x, m_pad)
    grid = (m_pad // tile_m,)

    vmem = 2 * tile_m * k * 4 + k * n * 2 + 2 * tile_m * n * 4 + 8 * n * 4
    cost = pl.CostEstimate(
        flops=2 * m_pad * k * n,
        transcendentals=0,
        bytes_accessed=m_pad * k * 4 + k * n * 2 + m_pad * n * 4)

    out = pl.pallas_call(
        functools.partial(_matmul_bias_kernel, relu=relu),
        out_shape=jax.ShapeDtypeStruct((m_pad, n), jnp.float32),
        grid=grid,
        in_specs=[
            pl.BlockSpec((tile_m, k), lambda i: (i, 0)),   # activations: tiled over M
            pl.BlockSpec((k, n), lambda i: (0, 0)),        # weights: resident
            pl.BlockSpec((1, n), lambda i: (0, 0)),        # bias: resident
        ],
        out_specs=pl.BlockSpec((tile_m, n), lambda i: (i, 0)),
        compiler_params=pltpu.CompilerParams(
            dimension_semantics=("parallel",),
            vmem_limit_bytes=_vmem_limit(vmem)),
        cost_estimate=cost,
    )(xp, w, b)
    return out[:m] if m_pad != m else out


def pallas_fc_head(x, w1, b1, w2, b2, num_actions):
    """Fused FC1(ReLU)+FC2.  x: (M, K) f32, w1: (K, H) bf16, w2: (H, Npad) bf16."""
    m, k = x.shape
    h = w1.shape[1]
    n_pad = w2.shape[1]
    tile_m = _choose_tile_m(m)
    m_pad = _round_up(m, tile_m)
    xp = _pad_rows(x, m_pad)
    grid = (m_pad // tile_m,)

    vmem = (2 * tile_m * k * 4 + k * h * 2 + h * n_pad * 2
            + 2 * tile_m * n_pad * 4 + tile_m * h * 4 + 8 * (h + n_pad) * 4)
    cost = pl.CostEstimate(
        flops=2 * m_pad * k * h + 2 * m_pad * h * n_pad,
        transcendentals=0,
        bytes_accessed=(m_pad * k * 4 + k * h * 2 + h * n_pad * 2
                        + m_pad * n_pad * 4))

    out = pl.pallas_call(
        _fc_head_kernel,
        out_shape=jax.ShapeDtypeStruct((m_pad, n_pad), jnp.float32),
        grid=grid,
        in_specs=[
            pl.BlockSpec((tile_m, k), lambda i: (i, 0)),
            pl.BlockSpec((k, h), lambda i: (0, 0)),
            pl.BlockSpec((1, h), lambda i: (0, 0)),
            pl.BlockSpec((h, n_pad), lambda i: (0, 0)),
            pl.BlockSpec((1, n_pad), lambda i: (0, 0)),
        ],
        out_specs=pl.BlockSpec((tile_m, n_pad), lambda i: (i, 0)),
        compiler_params=pltpu.CompilerParams(
            dimension_semantics=("parallel",),
            vmem_limit_bytes=_vmem_limit(vmem)),
        cost_estimate=cost,
    )(xp, w1, b1, w2, b2)
    return out[:m, :num_actions]


# ---------------------------------------------------------------------------
# Conv lowering (NHWC im2col, XLA glue) + Pallas matmul
# ---------------------------------------------------------------------------

def _im2col_nhwc(x, ksize, stride):
    """(N,H,W,C) -> (N*Ho*Wo, K*K*C) patches, feature order (kh, kw, c)."""
    n, hh, ww, c = x.shape
    ho = (hh - ksize) // stride + 1
    wo = (ww - ksize) // stride + 1
    cols = []
    for di in range(ksize):
        for dj in range(ksize):
            sl = jax.lax.slice(
                x,
                (0, di, dj, 0),
                (n, di + (ho - 1) * stride + 1, dj + (wo - 1) * stride + 1, c),
                (1, stride, stride, 1))
            cols.append(sl)                              # (n, ho, wo, c)
    patches = jnp.concatenate(cols, axis=-1)             # (n, ho, wo, K*K*C)
    return patches.reshape(n * ho * wo, ksize * ksize * c), ho, wo


def conv2d_relu_nhwc(x, w_mat, b, ksize, stride):
    """Conv2d(valid, stride)+ReLU via im2col + Pallas matmul; NHWC in/out."""
    n = x.shape[0]
    cout = w_mat.shape[1]
    patches, ho, wo = _im2col_nhwc(x, ksize, stride)
    y = pallas_matmul_bias(patches, w_mat, b, relu=True)
    return y.reshape(n, ho, wo, cout)


# ---------------------------------------------------------------------------
# Parameters
# ---------------------------------------------------------------------------

def _out_size(s, k, st):
    return (s - k) // st + 1


def _conv_spatial(hh, ww):
    h1, w1 = _out_size(hh, 8, 4), _out_size(ww, 8, 4)
    h2, w2 = _out_size(h1, 4, 2), _out_size(w1, 4, 2)
    return _out_size(h2, 3, 1), _out_size(w2, 3, 1)


def init_params(key, input_shape, num_actions):
    """PyTorch-layout parameters (conv: (Cout,Cin,KH,KW); linear: (out,in))."""
    hh, ww, c = input_shape
    h3, w3 = _conv_spatial(hh, ww)
    conv_out = 64 * h3 * w3
    keys = jax.random.split(key, 5)

    def he(k, shape, fan_in):
        return jax.random.normal(k, shape, jnp.float32) * (2.0 / fan_in) ** 0.5

    p = {
        "conv1_w": he(keys[0], (32, c, 8, 8), c * 8 * 8),
        "conv1_b": jnp.zeros((32,), jnp.float32),
        "conv2_w": he(keys[1], (64, 32, 4, 4), 32 * 4 * 4),
        "conv2_b": jnp.zeros((64,), jnp.float32),
        "conv3_w": he(keys[2], (64, 64, 3, 3), 64 * 3 * 3),
        "conv3_b": jnp.zeros((64,), jnp.float32),
        "fc1_w": he(keys[3], (512, conv_out), conv_out),
        "fc1_b": jnp.zeros((512,), jnp.float32),
        "fc2_w": he(keys[4], (num_actions, 512), 512),
        "fc2_b": jnp.zeros((num_actions,), jnp.float32),
    }
    return p, conv_out


def pack_params(p, input_shape, num_actions):
    """One-time repack of torch-layout params into kernel layouts:
    NHWC-im2col conv weight matrices (bf16), NHWC-flatten-ordered fc1_w (bf16),
    lane-padded (->128) fc2 weight/bias."""
    hh, ww, _ = input_shape
    h3, w3 = _conv_spatial(hh, ww)

    def conv_mat(w):
        cout, cin, kh, kw = w.shape
        # rows ordered (kh, kw, cin) == im2col feature order in NHWC
        return (jnp.transpose(w, (2, 3, 1, 0))
                .reshape(kh * kw * cin, cout).astype(jnp.bfloat16))

    # torch flattens NCHW (c,h,w); we flatten NHWC (h,w,c) -> permute fc1 rows once.
    fc1 = p["fc1_w"].reshape(512, 64, h3, w3)
    fc1 = (jnp.transpose(fc1, (2, 3, 1, 0))
           .reshape(h3 * w3 * 64, 512).astype(jnp.bfloat16))

    a = num_actions
    a_pad = _round_up(max(a, 128), 128)
    fc2 = jnp.pad(p["fc2_w"].T, ((0, 0), (0, a_pad - a))).astype(jnp.bfloat16)
    fc2_b = jnp.pad(p["fc2_b"], (0, a_pad - a)).reshape(1, a_pad)

    return {
        "w1": conv_mat(p["conv1_w"]), "b1": p["conv1_b"].reshape(1, -1),
        "w2": conv_mat(p["conv2_w"]), "b2": p["conv2_b"].reshape(1, -1),
        "w3": conv_mat(p["conv3_w"]), "b3": p["conv3_b"].reshape(1, -1),
        "fc1_w": fc1, "fc1_b": p["fc1_b"].reshape(1, -1),
        "fc2_w": fc2, "fc2_b": fc2_b,
    }


# ---------------------------------------------------------------------------
# Forward pass (matches the PyTorch module's semantics; NHWC input)
# ---------------------------------------------------------------------------

def cnn_forward(packed, x, *, num_actions):
    """x: (N, H, W, C) or (H, W, C) — same input convention as the torch module."""
    if x.ndim == 3:
        x = x[None, ...]
    x = x.astype(jnp.float32)
    nb = x.shape[0]
    x = conv2d_relu_nhwc(x, packed["w1"], packed["b1"], 8, 4)
    x = conv2d_relu_nhwc(x, packed["w2"], packed["b2"], 4, 2)
    x = conv2d_relu_nhwc(x, packed["w3"], packed["b3"], 3, 1)
    x = x.reshape(nb, -1)   # NHWC flatten; fc1_w was permuted to match at pack time
    return pallas_fc_head(x, packed["fc1_w"], packed["fc1_b"],
                          packed["fc2_w"], packed["fc2_b"], num_actions)


if __name__ == "__main__":
    key = jax.random.PRNGKey(0)
    input_shape = (36, 36, 4)     # (H, W, C): 36 -> 8 -> 3 -> 1  => conv_out = 64
    num_actions = 6
    batch = 2

    pkey, xkey = jax.random.split(key)
    raw_params, conv_out = init_params(pkey, input_shape, num_actions)
    assert conv_out == 64
    packed = pack_params(raw_params, input_shape, num_actions)

    x = jax.random.normal(xkey, (batch,) + input_shape, jnp.float32)
    fwd = jax.jit(functools.partial(cnn_forward, num_actions=num_actions))
    out = fwd(packed, x)
    jax.block_until_ready(out)
    assert out.shape == (batch, num_actions)
    print("KERNEL_OK")
</pallas_src>

<mosaic_0001>
module attributes {stable_mosaic.version = 11 : i64} {
  func.func @_matmul_bias_kernel(%arg0: i32, %arg1: memref<128x256xf32, #tpu.memory_space<vmem>>, %arg2: memref<256x32xbf16, #tpu.memory_space<vmem>>, %arg3: memref<1x32xf32, #tpu.memory_space<vmem>>, %arg4: memref<128x32xf32, #tpu.memory_space<vmem>>) attributes {dimension_semantics = [#tpu.dimension_semantics<parallel>], iteration_bounds = array<i64: 1>, scalar_prefetch = 0 : i64, scratch_operands = 0 : i64, tpu.core_type = #tpu.core_type<tc>, window_params = [{transform_indices = @transform_0, window_bounds = array<i64: 128, 256>}, {pipeline_mode = #tpu.pipeline_mode<synchronous>, transform_indices = @transform_1, window_bounds = array<i64: 256, 32>}, {pipeline_mode = #tpu.pipeline_mode<synchronous>, transform_indices = @transform_2, window_bounds = array<i64: 1, 32>}, {transform_indices = @transform_3, window_bounds = array<i64: 128, 32>}]} {
    %c0 = arith.constant 0 : index
    %c0_0 = arith.constant 0 : index
    %0 = vector.load %arg1[%c0, %c0_0] : memref<128x256xf32, #tpu.memory_space<vmem>>, vector<128x256xf32>
    %1 = arith.truncf %0 : vector<128x256xf32> to vector<128x256xbf16>
    %c0_1 = arith.constant 0 : index
    %c0_2 = arith.constant 0 : index
    %2 = vector.load %arg2[%c0_1, %c0_2] : memref<256x32xbf16, #tpu.memory_space<vmem>>, vector<256x32xbf16>
    %cst = arith.constant dense<0.000000e+00> : vector<128x32xf32>
    %3 = tpu.matmul %1, %2, %cst {dimension_numbers = #tpu.dot_dimension_numbers<[1], [0], [0], [1], [0, 0, 1, 1], [], []>} : vector<128x256xbf16>, vector<256x32xbf16>, vector<128x32xf32> -> vector<128x32xf32>
    %c0_3 = arith.constant 0 : index
    %c0_4 = arith.constant 0 : index
    %4 = vector.load %arg3[%c0_3, %c0_4] : memref<1x32xf32, #tpu.memory_space<vmem>>, vector<1x32xf32>
    %5 = vector.broadcast %4 : vector<1x32xf32> to vector<128x32xf32>
    %6 = arith.addf %3, %5 : vector<128x32xf32>
    %cst_5 = arith.constant 0.000000e+00 : f32
    %7 = vector.broadcast %cst_5 : f32 to vector<128x32xf32>
    %8 = arith.maximumf %6, %7 : vector<128x32xf32>
    %c0_6 = arith.constant 0 : index
    %c0_7 = arith.constant 0 : index
    %9 = vector.load %arg4[%c0_6, %c0_7] : memref<128x32xf32, #tpu.memory_space<vmem>>, vector<128x32xf32>
    tpu.vector_store %arg4[%c0_6, %c0_7], %8 {strides = array<i32>} : memref<128x32xf32, #tpu.memory_space<vmem>>, vector<128x32xf32>,
    return
  }
  func.func @transform_0(%arg0: i32) -> (i32, i32) {
    %c0_i32 = arith.constant 0 : i32
    %c0_i32_0 = arith.constant 0 : i32
    return %arg0, %c0_i32 : i32, i32
  }
  func.func @transform_1(%arg0: i32) -> (i32, i32) {
    %c0_i32 = arith.constant 0 : i32
    %c0_i32_0 = arith.constant 0 : i32
    %c0_i32_1 = arith.constant 0 : i32
    return %c0_i32, %c0_i32_0 : i32, i32
  }
  func.func @transform_2(%arg0: i32) -> (i32, i32) {
    %c0_i32 = arith.constant 0 : i32
    %c0_i32_0 = arith.constant 0 : i32
    %c0_i32_1 = arith.constant 0 : i32
    return %c0_i32, %c0_i32_0 : i32, i32
  }
  func.func @transform_3(%arg0: i32) -> (i32, i32) {
    %c0_i32 = arith.constant 0 : i32
    %c0_i32_0 = arith.constant 0 : i32
    return %arg0, %c0_i32 : i32, i32
  }
}

module attributes {stable_mosaic.version = 11 : i64} {
  func.func @_matmul_bias_kernel(%arg0: i32, %arg1: memref<24x512xf32, #tpu.memory_space<vmem>>, %arg2: memref<512x64xbf16, #tpu.memory_space<vmem>>, %arg3: memref<1x64xf32, #tpu.memory_space<vmem>>, %arg4: memref<24x64xf32, #tpu.memory_space<vmem>>) attributes {dimension_semantics = [#tpu.dimension_semantics<parallel>], iteration_bounds = array<i64: 1>, scalar_prefetch = 0 : i64, scratch_operands = 0 : i64, tpu.core_type = #tpu.core_type<tc>, window_params = [{transform_indices = @transform_0, window_bounds = array<i64: 24, 512>}, {pipeline_mode = #tpu.pipeline_mode<synchronous>, transform_indices = @transform_1, window_bounds = array<i64: 512, 64>}, {pipeline_mode = #tpu.pipeline_mode<synchronous>, transform_indices = @transform_2, window_bounds = array<i64: 1, 64>}, {transform_indices = @transform_3, window_bounds = array<i64: 24, 64>}]} {
    %c0 = arith.constant 0 : index
    %c0_0 = arith.constant 0 : index
    %0 = vector.load %arg1[%c0, %c0_0] : memref<24x512xf32, #tpu.memory_space<vmem>>, vector<24x512xf32>
    %1 = arith.truncf %0 : vector<24x512xf32> to vector<24x512xbf16>
    %c0_1 = arith.constant 0 : index
    %c0_2 = arith.constant 0 : index
    %2 = vector.load %arg2[%c0_1, %c0_2] : memref<512x64xbf16, #tpu.memory_space<vmem>>, vector<512x64xbf16>
    %cst = arith.constant dense<0.000000e+00> : vector<24x64xf32>
    %3 = tpu.matmul %1, %2, %cst {dimension_numbers = #tpu.dot_dimension_numbers<[1], [0], [0], [1], [0, 0, 1, 1], [], []>} : vector<24x512xbf16>, vector<512x64xbf16>, vector<24x64xf32> -> vector<24x64xf32>
    %c0_3 = arith.constant 0 : index
    %c0_4 = arith.constant 0 : index
    %4 = vector.load %arg3[%c0_3, %c0_4] : memref<1x64xf32, #tpu.memory_space<vmem>>, vector<1x64xf32>
    %5 = vector.broadcast %4 : vector<1x64xf32> to vector<24x64xf32>
    %6 = arith.addf %3, %5 : vector<24x64xf32>
    %cst_5 = arith.constant 0.000000e+00 : f32
    %7 = vector.broadcast %cst_5 : f32 to vector<24x64xf32>
    %8 = arith.maximumf %6, %7 : vector<24x64xf32>
    %c0_6 = arith.constant 0 : index
    %c0_7 = arith.constant 0 : index
    %9 = vector.load %arg4[%c0_6, %c0_7] : memref<24x64xf32, #tpu.memory_space<vmem>>, vector<24x64xf32>
    tpu.vector_store %arg4[%c0_6, %c0_7], %8 {strides = array<i32>} : memref<24x64xf32, #tpu.memory_space<vmem>>, vector<24x64xf32>,
    return
  }
  func.func @transform_0(%arg0: i32) -> (i32, i32) {
    %c0_i32 = arith.constant 0 : i32
    %c0_i32_0 = arith.constant 0 : i32
    return %arg0, %c0_i32 : i32, i32
  }
  func.func @transform_1(%arg0: i32) -> (i32, i32) {
    %c0_i32 = arith.constant 0 : i32
    %c0_i32_0 = arith.constant 0 : i32
    %c0_i32_1 = arith.constant 0 : i32
    return %c0_i32, %c0_i32_0 : i32, i32
  }
  func.func @transform_2(%arg0: i32) -> (i32, i32) {
    %c0_i32 = arith.constant 0 : i32
    %c0_i32_0 = arith.constant 0 : i32
    %c0_i32_1 = arith.constant 0 : i32
    return %c0_i32, %c0_i32_0 : i32, i32
  }
  func.func @transform_3(%arg0: i32) -> (i32, i32) {
    %c0_i32 = arith.constant 0 : i32
    %c0_i32_0 = arith.constant 0 : i32
    return %arg0, %c0_i32 : i32, i32
  }
}

module attributes {stable_mosaic.version = 11 : i64} {
  func.func @_matmul_bias_kernel(%arg0: i32, %arg1: memref<8x576xf32, #tpu.memory_space<vmem>>, %arg2: memref<576x64xbf16, #tpu.memory_space<vmem>>, %arg3: memref<1x64xf32, #tpu.memory_space<vmem>>, %arg4: memref<8x64xf32, #tpu.memory_space<vmem>>) attributes {dimension_semantics = [#tpu.dimension_semantics<parallel>], iteration_bounds = array<i64: 1>, scalar_prefetch = 0 : i64, scratch_operands = 0 : i64, tpu.core_type = #tpu.core_type<tc>, window_params = [{transform_indices = @transform_0, window_bounds = array<i64: 8, 576>}, {pipeline_mode = #tpu.pipeline_mode<synchronous>, transform_indices = @transform_1, window_bounds = array<i64: 576, 64>}, {pipeline_mode = #tpu.pipeline_mode<synchronous>, transform_indices = @transform_2, window_bounds = array<i64: 1, 64>}, {transform_indices = @transform_3, window_bounds = array<i64: 8, 64>}]} {
    %c0 = arith.constant 0 : index
    %c0_0 = arith.constant 0 : index
    %0 = vector.load %arg1[%c0, %c0_0] : memref<8x576xf32, #tpu.memory_space<vmem>>, vector<8x576xf32>
    %1 = arith.truncf %0 : vector<8x576xf32> to vector<8x576xbf16>
    %c0_1 = arith.constant 0 : index
    %c0_2 = arith.constant 0 : index
    %2 = vector.load %arg2[%c0_1, %c0_2] : memref<576x64xbf16, #tpu.memory_space<vmem>>, vector<576x64xbf16>
    %cst = arith.constant dense<0.000000e+00> : vector<8x64xf32>
    %3 = tpu.matmul %1, %2, %cst {dimension_numbers = #tpu.dot_dimension_numbers<[1], [0], [0], [1], [0, 0, 1, 1], [], []>} : vector<8x576xbf16>, vector<576x64xbf16>, vector<8x64xf32> -> vector<8x64xf32>
    %c0_3 = arith.constant 0 : index
    %c0_4 = arith.constant 0 : index
    %4 = vector.load %arg3[%c0_3, %c0_4] : memref<1x64xf32, #tpu.memory_space<vmem>>, vector<1x64xf32>
    %5 = vector.broadcast %4 : vector<1x64xf32> to vector<8x64xf32>
    %6 = arith.addf %3, %5 : vector<8x64xf32>
    %cst_5 = arith.constant 0.000000e+00 : f32
    %7 = vector.broadcast %cst_5 : f32 to vector<8x64xf32>
    %8 = arith.maximumf %6, %7 : vector<8x64xf32>
    %c0_6 = arith.constant 0 : index
    %c0_7 = arith.constant 0 : index
    %9 = vector.load %arg4[%c0_6, %c0_7] : memref<8x64xf32, #tpu.memory_space<vmem>>, vector<8x64xf32>
    tpu.vector_store %arg4[%c0_6, %c0_7], %8 {strides = array<i32>} : memref<8x64xf32, #tpu.memory_space<vmem>>, vector<8x64xf32>,
    return
  }
  func.func @transform_0(%arg0: i32) -> (i32, i32) {
    %c0_i32 = arith.constant 0 : i32
    %c0_i32_0 = arith.constant 0 : i32
    return %arg0, %c0_i32 : i32, i32
  }
  func.func @transform_1(%arg0: i32) -> (i32, i32) {
    %c0_i32 = arith.constant 0 : i32
    %c0_i32_0 = arith.constant 0 : i32
    %c0_i32_1 = arith.constant 0 : i32
    return %c0_i32, %c0_i32_0 : i32, i32
  }
  func.func @transform_2(%arg0: i32) -> (i32, i32) {
    %c0_i32 = arith.constant 0 : i32
    %c0_i32_0 = arith.constant 0 : i32
    %c0_i32_1 = arith.constant 0 : i32
    return %c0_i32, %c0_i32_0 : i32, i32
  }
  func.func @transform_3(%arg0: i32) -> (i32, i32) {
    %c0_i32 = arith.constant 0 : i32
    %c0_i32_0 = arith.constant 0 : i32
    return %arg0, %c0_i32 : i32, i32
  }
}

module attributes {stable_mosaic.version = 11 : i64} {
  func.func @_fc_head_kernel(%arg0: i32, %arg1: memref<8x64xf32, #tpu.memory_space<vmem>>, %arg2: memref<64x512xbf16, #tpu.memory_space<vmem>>, %arg3: memref<1x512xf32, #tpu.memory_space<vmem>>, %arg4: memref<512x128xbf16, #tpu.memory_space<vmem>>, %arg5: memref<1x128xf32, #tpu.memory_space<vmem>>, %arg6: memref<8x128xf32, #tpu.memory_space<vmem>>) attributes {dimension_semantics = [#tpu.dimension_semantics<parallel>], iteration_bounds = array<i64: 1>, scalar_prefetch = 0 : i64, scratch_operands = 0 : i64, tpu.core_type = #tpu.core_type<tc>, window_params = [{transform_indices = @transform_0, window_bounds = array<i64: 8, 64>}, {pipeline_mode = #tpu.pipeline_mode<synchronous>, transform_indices = @transform_1, window_bounds = array<i64: 64, 512>}, {pipeline_mode = #tpu.pipeline_mode<synchronous>, transform_indices = @transform_2, window_bounds = array<i64: 1, 512>}, {pipeline_mode = #tpu.pipeline_mode<synchronous>, transform_indices = @transform_3, window_bounds = array<i64: 512, 128>}, {pipeline_mode = #tpu.pipeline_mode<synchronous>, transform_indices = @transform_4, window_bounds = array<i64: 1, 128>}, {transform_indices = @transform_5, window_bounds = array<i64: 8, 128>}]} {
    %c0 = arith.constant 0 : index
    %c0_0 = arith.constant 0 : index
    %0 = vector.load %arg1[%c0, %c0_0] : memref<8x64xf32, #tpu.memory_space<vmem>>, vector<8x64xf32>
    %1 = arith.truncf %0 : vector<8x64xf32> to vector<8x64xbf16>
    %c0_1 = arith.constant 0 : index
    %c0_2 = arith.constant 0 : index
    %2 = vector.load %arg2[%c0_1, %c0_2] : memref<64x512xbf16, #tpu.memory_space<vmem>>, vector<64x512xbf16>
    %cst = arith.constant dense<0.000000e+00> : vector<8x512xf32>
    %3 = tpu.matmul %1, %2, %cst {dimension_numbers = #tpu.dot_dimension_numbers<[1], [0], [0], [1], [0, 0, 1, 1], [], []>} : vector<8x64xbf16>, vector<64x512xbf16>, vector<8x512xf32> -> vector<8x512xf32>
    %c0_3 = arith.constant 0 : index
    %c0_4 = arith.constant 0 : index
    %4 = vector.load %arg3[%c0_3, %c0_4] : memref<1x512xf32, #tpu.memory_space<vmem>>, vector<1x512xf32>
    %5 = vector.broadcast %4 : vector<1x512xf32> to vector<8x512xf32>
    %6 = arith.addf %3, %5 : vector<8x512xf32>
    %cst_5 = arith.constant 0.000000e+00 : f32
    %7 = vector.broadcast %cst_5 : f32 to vector<8x512xf32>
    %8 = arith.maximumf %6, %7 : vector<8x512xf32>
    %9 = arith.truncf %8 : vector<8x512xf32> to vector<8x512xbf16>
    %c0_6 = arith.constant 0 : index
    %c0_7 = arith.constant 0 : index
    %10 = vector.load %arg4[%c0_6, %c0_7] : memref<512x128xbf16, #tpu.memory_space<vmem>>, vector<512x128xbf16>
    %cst_8 = arith.constant dense<0.000000e+00> : vector<8x128xf32>
    %11 = tpu.matmul %9, %10, %cst_8 {dimension_numbers = #tpu.dot_dimension_numbers<[1], [0], [0], [1], [0, 0, 1, 1], [], []>} : vector<8x512xbf16>, vector<512x128xbf16>, vector<8x128xf32> -> vector<8x128xf32>
    %c0_9 = arith.constant 0 : index
    %c0_10 = arith.constant 0 : index
    %12 = vector.load %arg5[%c0_9, %c0_10] : memref<1x128xf32, #tpu.memory_space<vmem>>, vector<1x128xf32>
    %13 = vector.broadcast %12 : vector<1x128xf32> to vector<8x128xf32>
    %14 = arith.addf %11, %13 : vector<8x128xf32>
    %c0_11 = arith.constant 0 : index
    %c0_12 = arith.constant 0 : index
    %15 = vector.load %arg6[%c0_11, %c0_12] : memref<8x128xf32, #tpu.memory_space<vmem>>, vector<8x128xf32>
    tpu.vector_store %arg6[%c0_11, %c0_12], %14 {strides = array<i32>} : memref<8x128xf32, #tpu.memory_space<vmem>>, vector<8x128xf32>,
    return
  }
  func.func @transform_0(%arg0: i32) -> (i32, i32) {
    %c0_i32 = arith.constant 0 : i32
    %c0_i32_0 = arith.constant 0 : i32
    return %arg0, %c0_i32 : i32, i32
  }
  func.func @transform_1(%arg0: i32) -> (i32, i32) {
    %c0_i32 = arith.constant 0 : i32
    %c0_i32_0 = arith.constant 0 : i32
    %c0_i32_1 = arith.constant 0 : i32
    return %c0_i32, %c0_i32_0 : i32, i32
  }
  func.func @transform_2(%arg0: i32) -> (i32, i32) {
    %c0_i32 = arith.constant 0 : i32
    %c0_i32_0 = arith.constant 0 : i32
    %c0_i32_1 = arith.constant 0 : i32
    return %c0_i32, %c0_i32_0 : i32, i32
  }
  func.func @transform_3(%arg0: i32) -> (i32, i32) {
    %c0_i32 = arith.constant 0 : i32
    %c0_i32_0 = arith.constant 0 : i32
    %c0_i32_1 = arith.constant 0 : i32
    return %c0_i32, %c0_i32_0 : i32, i32
  }
  func.func @transform_4(%arg0: i32) -> (i32, i32) {
    %c0_i32 = arith.constant 0 : i32
    %c0_i32_0 = arith.constant 0 : i32
    %c0_i32_1 = arith.constant 0 : i32
    return %c0_i32, %c0_i32_0 : i32, i32
  }
  func.func @transform_5(%arg0: i32) -> (i32, i32) {
    %c0_i32 = arith.constant 0 : i32
    %c0_i32_0 = arith.constant 0 : i32
    return %arg0, %c0_i32 : i32, i32
  }
}

</mosaic_0001>

<llo_original>
// kernel: cnn_forward.4
$region0: #{cnn_forward.4}
  #allocation0 [shape = 'u32[]', space=smem, size = 0x4, offset = 0x4, fixed_abs, tag = 'smem constant byte address 0x4 - core index']
  #allocation1 [shape = 'u32[72,128]{1,0:T(1,128)}', space=vmem, size = 0x9000, scoped, tag = 'internal scratch']
  %s0 = inlined_call_operand.vmem [shape: f32[128,256], index: 0, kind: input, shape index: {}]
  %s1 = inlined_call_operand.vmem [shape: bf16[256,32], index: 1, kind: input, shape index: {}]
  %s2 = inlined_call_operand.vmem [shape: f32[1,32], index: 2, kind: input, shape index: {}]
  %s3 = inlined_call_operand.vmem [shape: f32[128,32], index: 3, kind: output, shape index: {}]
  %s4 = sld [smem:[#allocation0]]
  $region22: #{cnn_forward.4} parent=0
    _
  %s6 = ssub.s32 1, %s4
  %s7 = scalar_select 0, %s6, %s4
  // Predicated region
  $region2: #{cnn_forward.4} parent=0 // pred_check
    _
  $region3: #{cnn_forward.4} parent=0 // pred_check_branch
    %9 = sbr.rel (0) target = $region5
  $region4: #{cnn_forward.4} parent=0 // pred_region
    _
  $region5: #{cnn_forward.4} parent=0 // pred_fallthru
    _
  // Predicated region
  $region6: #{cnn_forward.4} parent=0 // pred_check
    _
  $region7: #{cnn_forward.4} parent=0 // pred_check_branch
    %11 = sbr.rel (0) target = $region9
  $region8: #{cnn_forward.4} parent=0 // pred_region
    _
  $region9: #{cnn_forward.4} parent=0 // pred_fallthru
    _
  // Predicated region
  $region10: #{cnn_forward.4} parent=0 // pred_check
    _
  $region11: #{cnn_forward.4} parent=0 // pred_check_branch
    %13 = sbr.rel (0) target = $region13
  $region12: #{cnn_forward.4} parent=0 // pred_region
    _
  $region13: #{cnn_forward.4} parent=0 // pred_fallthru
    _
  %v14 = vld [vmem:[%s0] sm:$0xff]
  %v15 = vld [vmem:[%s0 + $0x8] sm:$0xff]
  %v16 = vld [vmem:[%s0 + $0x10] sm:$0xff]
  %v17 = vld [vmem:[%s0 + $0x18] sm:$0xff]
  %v18 = vld [vmem:[%s0 + $0x20] sm:$0xff]
  %v19 = vld [vmem:[%s0 + $0x28] sm:$0xff]
  %v20 = vld [vmem:[%s0 + $0x30] sm:$0xff]
  %v21 = vld [vmem:[%s0 + $0x38] sm:$0xff]
  %v22 = vld [vmem:[%s0 + $0x40] sm:$0xff]
  %v23 = vld [vmem:[%s0 + $0x48] sm:$0xff]
  %v24 = vld [vmem:[%s0 + $0x50] sm:$0xff]
  %v25 = vld [vmem:[%s0 + $0x58] sm:$0xff]
  %v26 = vld [vmem:[%s0 + $0x60] sm:$0xff]
  %v27 = vld [vmem:[%s0 + $0x68] sm:$0xff]
  %v28 = vld [vmem:[%s0 + $0x70] sm:$0xff]
  %v29 = vld [vmem:[%s0 + $0x78] sm:$0xff]
  %v30 = vld [vmem:[%s0 + $0x80] sm:$0xff]
  %v31 = vld [vmem:[%s0 + $0x88] sm:$0xff]
  %v32 = vld [vmem:[%s0 + $0x90] sm:$0xff]
  %v33 = vld [vmem:[%s0 + $0x98] sm:$0xff]
  %v34 = vld [vmem:[%s0 + $0xa0] sm:$0xff]
  %v35 = vld [vmem:[%s0 + $0xa8] sm:$0xff]
  %v36 = vld [vmem:[%s0 + $0xb0] sm:$0xff]
  %v37 = vld [vmem:[%s0 + $0xb8] sm:$0xff]
  %v38 = vld [vmem:[%s0 + $0xc0] sm:$0xff]
  %v39 = vld [vmem:[%s0 + $0xc8] sm:$0xff]
  %v40 = vld [vmem:[%s0 + $0xd0] sm:$0xff]
  %v41 = vld [vmem:[%s0 + $0xd8] sm:$0xff]
  %v42 = vld [vmem:[%s0 + $0xe0] sm:$0xff]
  %v43 = vld [vmem:[%s0 + $0xe8] sm:$0xff]
  %v44 = vld [vmem:[%s0 + $0xf0] sm:$0xff]
  %v45 = vld [vmem:[%s0 + $0xf8] sm:$0xff]
  %v46 = vpack.c.bf16 %v16, %v14
  %v47 = vpack.c.bf16 %v17, %v15
  %v48 = vpack.c.bf16 %v20, %v18
  %v49 = vpack.c.bf16 %v21, %v19
  %v50 = vpack.c.bf16 %v24, %v22
  %v51 = vpack.c.bf16 %v25, %v23
  %v52 = vpack.c.bf16 %v28, %v26
  %v53 = vpack.c.bf16 %v29, %v27
  %v54 = vpack.c.bf16 %v32, %v30
  %v55 = vpack.c.bf16 %v33, %v31
  %v56 = vpack.c.bf16 %v36, %v34
  %v57 = vpack.c.bf16 %v37, %v35
  %v58 = vpack.c.bf16 %v40, %v38
  %v59 = vpack.c.bf16 %v41, %v39
  %v60 = vpack.c.bf16 %v44, %v42
  %v61 = vpack.c.bf16 %v45, %v43
  %v62 = vld [vmem:[%s1] sm:$0xf]
  %v63 = vld [vmem:[%s1 + $0x4] sm:$0xf]
  %v64 = vld [vmem:[%s1 + $0x8] sm:$0xf]
  %v65 = vld [vmem:[%s1 + $0xc] sm:$0xf]
  %v66 = vld [vmem:[%s1 + $0x10] sm:$0xf]
  %v67 = vld [vmem:[%s1 + $0x14] sm:$0xf]
  %v68 = vld [vmem:[%s1 + $0x18] sm:$0xf]
  %v69 = vld [vmem:[%s1 + $0x1c] sm:$0xf]
  %v70 = vld [vmem:[%s1 + $0x20] sm:$0xf]
  %v71 = vld [vmem:[%s1 + $0x24] sm:$0xf]
  %v72 = vld [vmem:[%s1 + $0x28] sm:$0xf]
  %v73 = vld [vmem:[%s1 + $0x2c] sm:$0xf]
  %v74 = vld [vmem:[%s1 + $0x30] sm:$0xf]
  %v75 = vld [vmem:[%s1 + $0x34] sm:$0xf]
  %v76 = vld [vmem:[%s1 + $0x38] sm:$0xf]
  %v77 = vld [vmem:[%s1 + $0x3c] sm:$0xf]
  %v78 = vld [vmem:[%s1 + $0x40] sm:$0xf]
  %v79 = vld [vmem:[%s1 + $0x44] sm:$0xf]
  %v80 = vld [vmem:[%s1 + $0x48] sm:$0xf]
  %v81 = vld [vmem:[%s1 + $0x4c] sm:$0xf]
  %v82 = vld [vmem:[%s1 + $0x50] sm:$0xf]
  %v83 = vld [vmem:[%s1 + $0x54] sm:$0xf]
  %v84 = vld [vmem:[%s1 + $0x58] sm:$0xf]
  %v85 = vld [vmem:[%s1 + $0x5c] sm:$0xf]
  %v86 = vld [vmem:[%s1 + $0x60] sm:$0xf]
  %v87 = vld [vmem:[%s1 + $0x64] sm:$0xf]
  %v88 = vld [vmem:[%s1 + $0x68] sm:$0xf]
  %v89 = vld [vmem:[%s1 + $0x6c] sm:$0xf]
  %v90 = vld [vmem:[%s1 + $0x70] sm:$0xf]
  %v91 = vld [vmem:[%s1 + $0x74] sm:$0xf]
  %v92 = vld [vmem:[%s1 + $0x78] sm:$0xf]
  %v93 = vld [vmem:[%s1 + $0x7c] sm:$0xf]
  %v94 = vld [vmem:[%s2] sm:$0x1]
  %v96 = vperm.slane %v94, 0
  %v130 = vunpack.c.l.b16 %v62
  %v131 = vunpack.c.l.b16 %v63
  %v132 = vunpack.c.l.b16 %v64
  %v133 = vunpack.c.l.b16 %v65
  %v134 = vunpack.c.l.b16 %v66
  %v135 = vunpack.c.l.b16 %v67
  %v136 = vunpack.c.l.b16 %v68
  %v137 = vunpack.c.l.b16 %v69
  %v138 = vunpack.c.l.b16 %v70
  %v139 = vunpack.c.l.b16 %v71
  %v140 = vunpack.c.l.b16 %v72
  %v141 = vunpack.c.l.b16 %v73
  %v142 = vunpack.c.l.b16 %v74
  %v143 = vunpack.c.l.b16 %v75
  %v144 = vunpack.c.l.b16 %v76
  %v145 = vunpack.c.l.b16 %v77
  %v146 = vunpack.c.l.b16 %v78
  %v147 = vunpack.c.l.b16 %v79
  %v148 = vunpack.c.l.b16 %v80
  %v149 = vunpack.c.l.b16 %v81
  %v150 = vunpack.c.l.b16 %v82
  %v151 = vunpack.c.l.b16 %v83
  %v152 = vunpack.c.l.b16 %v84
  %v153 = vunpack.c.l.b16 %v85
  %v154 = vunpack.c.l.b16 %v86
  %v155 = vunpack.c.l.b16 %v87
  %v156 = vunpack.c.l.b16 %v88
  %v157 = vunpack.c.l.b16 %v89
  %v158 = vunpack.c.l.b16 %v90
  %v159 = vunpack.c.l.b16 %v91
  %v160 = vunpack.c.l.b16 %v92
  %v161 = vunpack.c.l.b16 %v93
  %v162 = vpack.c.b16 %v131, %v130
  %v163 = vpack.c.b16 %v133, %v132
  %v164 = vpack.c.b16 %v135, %v134
  %v165 = vpack.c.b16 %v137, %v136
  %v166 = vpack.c.b16 %v139, %v138
  %v167 = vpack.c.b16 %v141, %v140
  %v168 = vpack.c.b16 %v143, %v142
  %v169 = vpack.c.b16 %v145, %v144
  %v170 = vpack.c.b16 %v147, %v146
  %v171 = vpack.c.b16 %v149, %v148
  %v172 = vpack.c.b16 %v151, %v150
  %v173 = vpack.c.b16 %v153, %v152
  %v174 = vpack.c.b16 %v155, %v154
  %v175 = vpack.c.b16 %v157, %v156
  %v176 = vpack.c.b16 %v159, %v158
  %v177 = vpack.c.b16 %v161, %v160
  %194 = vmatpush.bf16.msra.mxu0 %v169
  %195 = vmatpush.bf16.msra.mxu0 %v168
  %196 = vmatpush.bf16.msra.mxu0 %v167
  %197 = vmatpush.bf16.msra.mxu0 %v166
  %198 = vmatpush.bf16.msra.mxu0 %v165
  %199 = vmatpush.bf16.msra.mxu0 %v164
  %200 = vmatpush.bf16.msra.mxu0 %v163
  %201 = vmatpush.bf16.msra.mxu0 %v162
  %202 = vmatmul.bf16.gmra.mxu0 %v46
  %v203 = vpop.f32.mrf.mxu0
  %v204 = vadd.f32 %v96, %v203
  %v205 = vpop.f32.mrf.mxu0
  %v206 = vadd.f32 %v96, %v205
  %207 = vmatmul.bf16.gmra.mxu0 %v48
  %v208 = vpop.f32.mrf.mxu0
  %v209 = vadd.f32 %v96, %v208
  %v210 = vpop.f32.mrf.mxu0
  %v211 = vadd.f32 %v96, %v210
  %212 = vmatmul.bf16.gmra.mxu0 %v50
  %v213 = vpop.f32.mrf.mxu0
  %v214 = vadd.f32 %v96, %v213
  %v215 = vpop.f32.mrf.mxu0
  %v216 = vadd.f32 %v96, %v215
  %217 = vmatmul.bf16.gmra.mxu0 %v52
  %v218 = vpop.f32.mrf.mxu0
  %v219 = vadd.f32 %v96, %v218
  %v220 = vpop.f32.mrf.mxu0
  %v221 = vadd.f32 %v96, %v220
  %222 = vmatmul.bf16.gmra.mxu0 %v54
  %v223 = vpop.f32.mrf.mxu0
  %v224 = vadd.f32 %v96, %v223
  %v225 = vpop.f32.mrf.mxu0
  %v226 = vadd.f32 %v96, %v225
  %227 = vmatmul.bf16.gmra.mxu0 %v56
  %v228 = vpop.f32.mrf.mxu0
  %v229 = vadd.f32 %v96, %v228
  %v230 = vpop.f32.mrf.mxu0
  %v231 = vadd.f32 %v96, %v230
  %232 = vmatmul.bf16.gmra.mxu0 %v58
  %v233 = vpop.f32.mrf.mxu0
  %v234 = vadd.f32 %v96, %v233
  %v235 = vpop.f32.mrf.mxu0
  %v236 = vadd.f32 %v96, %v235
  %237 = vmatmul.bf16.gmra.mxu0 %v60
  %v238 = vpop.f32.mrf.mxu0
  %v239 = vadd.f32 %v96, %v238
  %v240 = vpop.f32.mrf.mxu0
  %v241 = vadd.f32 %v96, %v240
  %242 = vdwg.mxu0
  %243 = vmatpush.bf16.msra.mxu0 %v177
  %244 = vmatpush.bf16.msra.mxu0 %v176
  %245 = vmatpush.bf16.msra.mxu0 %v175
  %246 = vmatpush.bf16.msra.mxu0 %v174
  %247 = vmatpush.bf16.msra.mxu0 %v173
  %248 = vmatpush.bf16.msra.mxu0 %v172
  %249 = vmatpush.bf16.msra.mxu0 %v171
  %250 = vmatpush.bf16.msra.mxu0 %v170
  %251 = vmatmul.bf16.gmra.mxu0 %v47
  %v252 = vpop.f32.mrf.mxu0
  %v253 = vadd.f32 %v204, %v252
  %v254 = vpop.f32.mrf.mxu0
  %v255 = vadd.f32 %v206, %v254
  %256 = vmatmul.bf16.gmra.mxu0 %v49
  %v257 = vpop.f32.mrf.mxu0
  %v258 = vadd.f32 %v209, %v257
  %v259 = vpop.f32.mrf.mxu0
  %v260 = vadd.f32 %v211, %v259
  %261 = vmatmul.bf16.gmra.mxu0 %v51
  %v262 = vpop.f32.mrf.mxu0
  %v263 = vadd.f32 %v214, %v262
  %v264 = vpop.f32.mrf.mxu0
  %v265 = vadd.f32 %v216, %v264
  %266 = vmatmul.bf16.gmra.mxu0 %v53
  %v267 = vpop.f32.mrf.mxu0
  %v268 = vadd.f32 %v219, %v267
  %v269 = vpop.f32.mrf.mxu0
  %v270 = vadd.f32 %v221, %v269
  %271 = vmatmul.bf16.gmra.mxu0 %v55
  %v272 = vpop.f32.mrf.mxu0
  %v273 = vadd.f32 %v224, %v272
  %v274 = vpop.f32.mrf.mxu0
  %v275 = vadd.f32 %v226, %v274
  %276 = vmatmul.bf16.gmra.mxu0 %v57
  %v277 = vpop.f32.mrf.mxu0
  %v278 = vadd.f32 %v229, %v277
  %v279 = vpop.f32.mrf.mxu0
  %v280 = vadd.f32 %v231, %v279
  %281 = vmatmul.bf16.gmra.mxu0 %v59
  %v282 = vpop.f32.mrf.mxu0
  %v283 = vadd.f32 %v234, %v282
  %v284 = vpop.f32.mrf.mxu0
  %v285 = vadd.f32 %v236, %v284
  %286 = vmatmul.bf16.gmra.mxu0 %v61
  %v287 = vpop.f32.mrf.mxu0
  %v288 = vadd.f32 %v239, %v287
  %v289 = vpop.f32.mrf.mxu0
  %v290 = vadd.f32 %v241, %v289
  %291 = vdwg.mxu0
  %v292 = vmax.f32 %v253, 0.0
  %v293 = vmax.f32 %v255, 0.0
  %v294 = vmax.f32 %v258, 0.0
  %v295 = vmax.f32 %v260, 0.0
  %v296 = vmax.f32 %v263, 0.0
  %v297 = vmax.f32 %v265, 0.0
  %v298 = vmax.f32 %v268, 0.0
  %v299 = vmax.f32 %v270, 0.0
  %v300 = vmax.f32 %v273, 0.0
  %v301 = vmax.f32 %v275, 0.0
  %v302 = vmax.f32 %v278, 0.0
  %v303 = vmax.f32 %v280, 0.0
  %v304 = vmax.f32 %v283, 0.0
  %v305 = vmax.f32 %v285, 0.0
  %v306 = vmax.f32 %v288, 0.0
  %v307 = vmax.f32 %v290, 0.0
  %vm308 = vcmask 261120
  %309 = vst.msk [vmem:[%s3] sm:$0xff] %vm308, %v292
  %310 = vst.msk [vmem:[%s3 + $0x8] sm:$0xff] %vm308, %v293
  %311 = vst.msk [vmem:[%s3 + $0x10] sm:$0xff] %vm308, %v294
  %312 = vst.msk [vmem:[%s3 + $0x18] sm:$0xff] %vm308, %v295
  %313 = vst.msk [vmem:[%s3 + $0x20] sm:$0xff] %vm308, %v296
  %314 = vst.msk [vmem:[%s3 + $0x28] sm:$0xff] %vm308, %v297
  %315 = vst.msk [vmem:[%s3 + $0x30] sm:$0xff] %vm308, %v298
  %316 = vst.msk [vmem:[%s3 + $0x38] sm:$0xff] %vm308, %v299
  %317 = vst.msk [vmem:[%s3 + $0x40] sm:$0xff] %vm308, %v300
  %318 = vst.msk [vmem:[%s3 + $0x48] sm:$0xff] %vm308, %v301
  %319 = vst.msk [vmem:[%s3 + $0x50] sm:$0xff] %vm308, %v302
  %320 = vst.msk [vmem:[%s3 + $0x58] sm:$0xff] %vm308, %v303
  %321 = vst.msk [vmem:[%s3 + $0x60] sm:$0xff] %vm308, %v304
  %322 = vst.msk [vmem:[%s3 + $0x68] sm:$0xff] %vm308, %v305
  %323 = vst.msk [vmem:[%s3 + $0x70] sm:$0xff] %vm308, %v306
  %324 = vst.msk [vmem:[%s3 + $0x78] sm:$0xff] %vm308, %v307
  // Predicated region
  $region14: #{cnn_forward.4} parent=0 // pred_check
    _
  $region15: #{cnn_forward.4} parent=0 // pred_check_branch
    %326 = sbr.rel (0) target = $region17
  $region16: #{cnn_forward.4} parent=0 // pred_region
    _
  $region17: #{cnn_forward.4} parent=0 // pred_fallthru
    _
  // Predicated region
  $region18: #{cnn_forward.4} parent=0 // pred_check
    _
  $region19: #{cnn_forward.4} parent=0 // pred_check_branch
    %328 = sbr.rel (0) target = $region21
  $region20: #{cnn_forward.4} parent=0 // pred_region
    _
  $region21: #{cnn_forward.4} parent=0 // pred_fallthru
    _

// kernel: cnn_forward.5
$region0: #{cnn_forward.5}
  #allocation0 [shape = 'u32[]', space=smem, size = 0x4, offset = 0x4, fixed_abs, tag = 'smem constant byte address 0x4 - core index']
  #allocation1 [shape = 'u32[72,128]{1,0:T(1,128)}', space=vmem, size = 0x9000, scoped, tag = 'internal scratch']
  %s0 = inlined_call_operand.vmem [shape: f32[24,512], index: 0, kind: input, shape index: {}]
  %s1 = inlined_call_operand.vmem [shape: bf16[512,64], index: 1, kind: input, shape index: {}]
  %s2 = inlined_call_operand.vmem [shape: f32[1,64], index: 2, kind: input, shape index: {}]
  %s3 = inlined_call_operand.vmem [shape: f32[24,64], index: 3, kind: output, shape index: {}]
  %s4 = sld [smem:[#allocation0]]
  $region22: #{cnn_forward.5} parent=0
    _
  %s6 = ssub.s32 1, %s4
  %s7 = scalar_select 0, %s6, %s4
  // Predicated region
  $region2: #{cnn_forward.5} parent=0 // pred_check
    _
  $region3: #{cnn_forward.5} parent=0 // pred_check_branch
    %9 = sbr.rel (0) target = $region5
  $region4: #{cnn_forward.5} parent=0 // pred_region
    _
  $region5: #{cnn_forward.5} parent=0 // pred_fallthru
    _
  // Predicated region
  $region6: #{cnn_forward.5} parent=0 // pred_check
    _
  $region7: #{cnn_forward.5} parent=0 // pred_check_branch
    %11 = sbr.rel (0) target = $region9
  $region8: #{cnn_forward.5} parent=0 // pred_region
    _
  $region9: #{cnn_forward.5} parent=0 // pred_fallthru
    _
  // Predicated region
  $region10: #{cnn_forward.5} parent=0 // pred_check
    _
  $region11: #{cnn_forward.5} parent=0 // pred_check_branch
    %13 = sbr.rel (0) target = $region13
  $region12: #{cnn_forward.5} parent=0 // pred_region
    _
  $region13: #{cnn_forward.5} parent=0 // pred_fallthru
    _
  %v14 = vld [vmem:[%s0] sm:$0xff]
  %v15 = vld [vmem:[%s0 + $0x8] sm:$0xff]
  %v16 = vld [vmem:[%s0 + $0x10] sm:$0xff]
  %v17 = vld [vmem:[%s0 + $0x18] sm:$0xff]
  %v18 = vld [vmem:[%s0 + $0x20] sm:$0xff]
  %v19 = vld [vmem:[%s0 + $0x28] sm:$0xff]
  %v20 = vld [vmem:[%s0 + $0x30] sm:$0xff]
  %v21 = vld [vmem:[%s0 + $0x38] sm:$0xff]
  %v22 = vld [vmem:[%s0 + $0x40] sm:$0xff]
  %v23 = vld [vmem:[%s0 + $0x48] sm:$0xff]
  %v24 = vld [vmem:[%s0 + $0x50] sm:$0xff]
  %v25 = vld [vmem:[%s0 + $0x58] sm:$0xff]
  %v26 = vpack.c.bf16 %v18, %v14
  %v27 = vpack.c.bf16 %v19, %v15
  %v28 = vpack.c.bf16 %v20, %v16
  %v29 = vpack.c.bf16 %v21, %v17
  %v30 = vpack.c.bf16 %v22, %v22
  %v31 = vpack.c.bf16 %v23, %v23
  %v32 = vpack.c.bf16 %v24, %v24
  %v33 = vpack.c.bf16 %v25, %v25
  %v34 = vld [vmem:[%s1] sm:$0xf]
  %v35 = vld [vmem:[%s1 + $0x4] sm:$0xf]
  %v36 = vld [vmem:[%s1 + $0x8] sm:$0xf]
  %v37 = vld [vmem:[%s1 + $0xc] sm:$0xf]
  %v38 = vld [vmem:[%s1 + $0x10] sm:$0xf]
  %v39 = vld [vmem:[%s1 + $0x14] sm:$0xf]
  %v40 = vld [vmem:[%s1 + $0x18] sm:$0xf]
  %v41 = vld [vmem:[%s1 + $0x1c] sm:$0xf]
  %v42 = vld [vmem:[%s1 + $0x20] sm:$0xf]
  %v43 = vld [vmem:[%s1 + $0x24] sm:$0xf]
  %v44 = vld [vmem:[%s1 + $0x28] sm:$0xf]
  %v45 = vld [vmem:[%s1 + $0x2c] sm:$0xf]
  %v46 = vld [vmem:[%s1 + $0x30] sm:$0xf]
  %v47 = vld [vmem:[%s1 + $0x34] sm:$0xf]
  %v48 = vld [vmem:[%s1 + $0x38] sm:$0xf]
  %v49 = vld [vmem:[%s1 + $0x3c] sm:$0xf]
  %v50 = vld [vmem:[%s1 + $0x40] sm:$0xf]
  %v51 = vld [vmem:[%s1 + $0x44] sm:$0xf]
  %v52 = vld [vmem:[%s1 + $0x48] sm:$0xf]
  %v53 = vld [vmem:[%s1 + $0x4c] sm:$0xf]
  %v54 = vld [vmem:[%s1 + $0x50] sm:$0xf]
  %v55 = vld [vmem:[%s1 + $0x54] sm:$0xf]
  %v56 = vld [vmem:[%s1 + $0x58] sm:$0xf]
  %v57 = vld [vmem:[%s1 + $0x5c] sm:$0xf]
  %v58 = vld [vmem:[%s1 + $0x60] sm:$0xf]
  %v59 = vld [vmem:[%s1 + $0x64] sm:$0xf]
  %v60 = vld [vmem:[%s1 + $0x68] sm:$0xf]
  %v61 = vld [vmem:[%s1 + $0x6c] sm:$0xf]
  %v62 = vld [vmem:[%s1 + $0x70] sm:$0xf]
  %v63 = vld [vmem:[%s1 + $0x74] sm:$0xf]
  %v64 = vld [vmem:[%s1 + $0x78] sm:$0xf]
  %v65 = vld [vmem:[%s1 + $0x7c] sm:$0xf]
  %v66 = vld [vmem:[%s1 + $0x80] sm:$0xf]
  %v67 = vld [vmem:[%s1 + $0x84] sm:$0xf]
  %v68 = vld [vmem:[%s1 + $0x88] sm:$0xf]
  %v69 = vld [vmem:[%s1 + $0x8c] sm:$0xf]
  %v70 = vld [vmem:[%s1 + $0x90] sm:$0xf]
  %v71 = vld [vmem:[%s1 + $0x94] sm:$0xf]
  %v72 = vld [vmem:[%s1 + $0x98] sm:$0xf]
  %v73 = vld [vmem:[%s1 + $0x9c] sm:$0xf]
  %v74 = vld [vmem:[%s1 + $0xa0] sm:$0xf]
  %v75 = vld [vmem:[%s1 + $0xa4] sm:$0xf]
  %v76 = vld [vmem:[%s1 + $0xa8] sm:$0xf]
  %v77 = vld [vmem:[%s1 + $0xac] sm:$0xf]
  %v78 = vld [vmem:[%s1 + $0xb0] sm:$0xf]
  %v79 = vld [vmem:[%s1 + $0xb4] sm:$0xf]
  %v80 = vld [vmem:[%s1 + $0xb8] sm:$0xf]
  %v81 = vld [vmem:[%s1 + $0xbc] sm:$0xf]
  %v82 = vld [vmem:[%s1 + $0xc0] sm:$0xf]
  %v83 = vld [vmem:[%s1 + $0xc4] sm:$0xf]
  %v84 = vld [vmem:[%s1 + $0xc8] sm:$0xf]
  %v85 = vld [vmem:[%s1 + $0xcc] sm:$0xf]
  %v86 = vld [vmem:[%s1 + $0xd0] sm:$0xf]
  %v87 = vld [vmem:[%s1 + $0xd4] sm:$0xf]
  %v88 = vld [vmem:[%s1 + $0xd8] sm:$0xf]
  %v89 = vld [vmem:[%s1 + $0xdc] sm:$0xf]
  %v90 = vld [vmem:[%s1 + $0xe0] sm:$0xf]
  %v91 = vld [vmem:[%s1 + $0xe4] sm:$0xf]
  %v92 = vld [vmem:[%s1 + $0xe8] sm:$0xf]
  %v93 = vld [vmem:[%s1 + $0xec] sm:$0xf]
  %v94 = vld [vmem:[%s1 + $0xf0] sm:$0xf]
  %v95 = vld [vmem:[%s1 + $0xf4] sm:$0xf]
  %v96 = vld [vmem:[%s1 + $0xf8] sm:$0xf]
  %v97 = vld [vmem:[%s1 + $0xfc] sm:$0xf]
  %v98 = vld [vmem:[%s2] sm:$0x1]
  %v100 = vperm.slane %v98, 0
  %v166 = vunpack.c.l.b16 %v34
  %v167 = vunpack.c.l.b16 %v35
  %v168 = vunpack.c.l.b16 %v36
  %v169 = vunpack.c.l.b16 %v37
  %v170 = vunpack.c.l.b16 %v38
  %v171 = vunpack.c.l.b16 %v39
  %v172 = vunpack.c.l.b16 %v40
  %v173 = vunpack.c.l.b16 %v41
  %v174 = vunpack.c.l.b16 %v42
  %v175 = vunpack.c.l.b16 %v43
  %v176 = vunpack.c.l.b16 %v44
  %v177 = vunpack.c.l.b16 %v45
  %v178 = vunpack.c.l.b16 %v46
  %v179 = vunpack.c.l.b16 %v47
  %v180 = vunpack.c.l.b16 %v48
  %v181 = vunpack.c.l.b16 %v49
  %v182 = vunpack.c.l.b16 %v50
  %v183 = vunpack.c.l.b16 %v51
  %v184 = vunpack.c.l.b16 %v52
  %v185 = vunpack.c.l.b16 %v53
  %v186 = vunpack.c.l.b16 %v54
  %v187 = vunpack.c.l.b16 %v55
  %v188 = vunpack.c.l.b16 %v56
  %v189 = vunpack.c.l.b16 %v57
  %v190 = vunpack.c.l.b16 %v58
  %v191 = vunpack.c.l.b16 %v59
  %v192 = vunpack.c.l.b16 %v60
  %v193 = vunpack.c.l.b16 %v61
  %v194 = vunpack.c.l.b16 %v62
  %v195 = vunpack.c.l.b16 %v63
  %v196 = vunpack.c.l.b16 %v64
  %v197 = vunpack.c.l.b16 %v65
  %v198 = vunpack.c.l.b16 %v66
  %v199 = vunpack.c.l.b16 %v67
  %v200 = vunpack.c.l.b16 %v68
  %v201 = vunpack.c.l.b16 %v69
  %v202 = vunpack.c.l.b16 %v70
  %v203 = vunpack.c.l.b16 %v71
  %v204 = vunpack.c.l.b16 %v72
  %v205 = vunpack.c.l.b16 %v73
  %v206 = vunpack.c.l.b16 %v74
  %v207 = vunpack.c.l.b16 %v75
  %v208 = vunpack.c.l.b16 %v76
  %v209 = vunpack.c.l.b16 %v77
  %v210 = vunpack.c.l.b16 %v78
  %v211 = vunpack.c.l.b16 %v79
  %v212 = vunpack.c.l.b16 %v80
  %v213 = vunpack.c.l.b16 %v81
  %v214 = vunpack.c.l.b16 %v82
  %v215 = vunpack.c.l.b16 %v83
  %v216 = vunpack.c.l.b16 %v84
  %v217 = vunpack.c.l.b16 %v85
  %v218 = vunpack.c.l.b16 %v86
  %v219 = vunpack.c.l.b16 %v87
  %v220 = vunpack.c.l.b16 %v88
  %v221 = vunpack.c.l.b16 %v89
  %v222 = vunpack.c.l.b16 %v90
  %v223 = vunpack.c.l.b16 %v91
  %v224 = vunpack.c.l.b16 %v92
  %v225 = vunpack.c.l.b16 %v93
  %v226 = vunpack.c.l.b16 %v94
  %v227 = vunpack.c.l.b16 %v95
  %v228 = vunpack.c.l.b16 %v96
  %v229 = vunpack.c.l.b16 %v97
  %v230 = vpack.c.b16 %v167, %v166
  %v231 = vpack.c.b16 %v169, %v168
  %v232 = vpack.c.b16 %v171, %v170
  %v233 = vpack.c.b16 %v173, %v172
  %v234 = vpack.c.b16 %v175, %v174
  %v235 = vpack.c.b16 %v177, %v176
  %v236 = vpack.c.b16 %v179, %v178
  %v237 = vpack.c.b16 %v181, %v180
  %v238 = vpack.c.b16 %v183, %v182
  %v239 = vpack.c.b16 %v185, %v184
  %v240 = vpack.c.b16 %v187, %v186
  %v241 = vpack.c.b16 %v189, %v188
  %v242 = vpack.c.b16 %v191, %v190
  %v243 = vpack.c.b16 %v193, %v192
  %v244 = vpack.c.b16 %v195, %v194
  %v245 = vpack.c.b16 %v197, %v196
  %v246 = vpack.c.b16 %v199, %v198
  %v247 = vpack.c.b16 %v201, %v200
  %v248 = vpack.c.b16 %v203, %v202
  %v249 = vpack.c.b16 %v205, %v204
  %v250 = vpack.c.b16 %v207, %v206
  %v251 = vpack.c.b16 %v209, %v208
  %v252 = vpack.c.b16 %v211, %v210
  %v253 = vpack.c.b16 %v213, %v212
  %v254 = vpack.c.b16 %v215, %v214
  %v255 = vpack.c.b16 %v217, %v216
  %v256 = vpack.c.b16 %v219, %v218
  %v257 = vpack.c.b16 %v221, %v220
  %v258 = vpack.c.b16 %v223, %v222
  %v259 = vpack.c.b16 %v225, %v224
  %v260 = vpack.c.b16 %v227, %v226
  %v261 = vpack.c.b16 %v229, %v228
  %294 = vmatpush.bf16.msra.mxu0 %v237
  %295 = vmatpush.bf16.msra.mxu0 %v236
  %296 = vmatpush.bf16.msra.mxu0 %v235
  %297 = vmatpush.bf16.msra.mxu0 %v234
  %298 = vmatpush.bf16.msra.mxu0 %v233
  %299 = vmatpush.bf16.msra.mxu0 %v232
  %300 = vmatpush.bf16.msra.mxu0 %v231
  %301 = vmatpush.bf16.msra.mxu0 %v230
  %302 = vmatmul.bf16.gmra.mxu0 %v26
  %v303 = vpop.f32.mrf.mxu0
  %v304 = vadd.f32 %v100, %v303
  %v305 = vpop.f32.mrf.mxu0
  %v306 = vadd.f32 %v100, %v305
  %307 = vmatmul.bf16.gmra.mxu0 %v30
  %v308 = vpop.f32.mrf.mxu0
  %v309 = vadd.f32 %v100, %v308
  %v310 = vpop.f32.mrf.mxu0
  %311 = vdwg.mxu0
  %312 = vmatpush.bf16.msra.mxu0 %v245
  %313 = vmatpush.bf16.msra.mxu0 %v244
  %314 = vmatpush.bf16.msra.mxu0 %v243
  %315 = vmatpush.bf16.msra.mxu0 %v242
  %316 = vmatpush.bf16.msra.mxu0 %v241
  %317 = vmatpush.bf16.msra.mxu0 %v240
  %318 = vmatpush.bf16.msra.mxu0 %v239
  %319 = vmatpush.bf16.msra.mxu0 %v238
  %320 = vmatmul.bf16.gmra.mxu0 %v27
  %v321 = vpop.f32.mrf.mxu0
  %v322 = vadd.f32 %v304, %v321
  %v323 = vpop.f32.mrf.mxu0
  %v324 = vadd.f32 %v306, %v323
  %325 = vmatmul.bf16.gmra.mxu0 %v31
  %v326 = vpop.f32.mrf.mxu0
  %v327 = vadd.f32 %v309, %v326
  %v328 = vpop.f32.mrf.mxu0
  %329 = vdwg.mxu0
  %330 = vmatpush.bf16.msra.mxu0 %v253
  %331 = vmatpush.bf16.msra.mxu0 %v252
  %332 = vmatpush.bf16.msra.mxu0 %v251
  %333 = vmatpush.bf16.msra.mxu0 %v250
  %334 = vmatpush.bf16.msra.mxu0 %v249
  %335 = vmatpush.bf16.msra.mxu0 %v248
  %336 = vmatpush.bf16.msra.mxu0 %v247
  %337 = vmatpush.bf16.msra.mxu0 %v246
  %338 = vmatmul.bf16.gmra.mxu0 %v28
  %v339 = vpop.f32.mrf.mxu0
  %v340 = vadd.f32 %v322, %v339
  %v341 = vpop.f32.mrf.mxu0
  %v342 = vadd.f32 %v324, %v341
  %343 = vmatmul.bf16.gmra.mxu0 %v32
  %v344 = vpop.f32.mrf.mxu0
  %v345 = vadd.f32 %v327, %v344
  %v346 = vpop.f32.mrf.mxu0
  %347 = vdwg.mxu0
  %348 = vmatpush.bf16.msra.mxu0 %v261
  %349 = vmatpush.bf16.msra.mxu0 %v260
  %350 = vmatpush.bf16.msra.mxu0 %v259
  %351 = vmatpush.bf16.msra.mxu0 %v258
  %352 = vmatpush.bf16.msra.mxu0 %v257
  %353 = vmatpush.bf16.msra.mxu0 %v256
  %354 = vmatpush.bf16.msra.mxu0 %v255
  %355 = vmatpush.bf16.msra.mxu0 %v254
  %356 = vmatmul.bf16.gmra.mxu0 %v29
  %v357 = vpop.f32.mrf.mxu0
  %v358 = vadd.f32 %v340, %v357
  %v359 = vpop.f32.mrf.mxu0
  %v360 = vadd.f32 %v342, %v359
  %361 = vmatmul.bf16.gmra.mxu0 %v33
  %v362 = vpop.f32.mrf.mxu0
  %v363 = vadd.f32 %v345, %v362
  %v364 = vpop.f32.mrf.mxu0
  %365 = vdwg.mxu0
  %v366 = vmax.f32 %v358, 0.0
  %v367 = vmax.f32 %v360, 0.0
  %v368 = vmax.f32 %v363, 0.0
  %vm369 = vcmask 523264
  %370 = vst.msk [vmem:[%s3] sm:$0xff] %vm369, %v366
  %371 = vst.msk [vmem:[%s3 + $0x8] sm:$0xff] %vm369, %v367
  %372 = vst.msk [vmem:[%s3 + $0x10] sm:$0xff] %vm369, %v368
  // Predicated region
  $region14: #{cnn_forward.5} parent=0 // pred_check
    _
  $region15: #{cnn_forward.5} parent=0 // pred_check_branch
    %374 = sbr.rel (0) target = $region17
  $region16: #{cnn_forward.5} parent=0 // pred_region
    _
  $region17: #{cnn_forward.5} parent=0 // pred_fallthru
    _
  // Predicated region
  $region18: #{cnn_forward.5} parent=0 // pred_check
    _
  $region19: #{cnn_forward.5} parent=0 // pred_check_branch
    %376 = sbr.rel (0) target = $region21
  $region20: #{cnn_forward.5} parent=0 // pred_region
    _
  $region21: #{cnn_forward.5} parent=0 // pred_fallthru
    _

// kernel: cnn_forward.6
$region0: #{cnn_forward.6}
  #allocation0 [shape = 'u32[]', space=smem, size = 0x4, offset = 0x4, fixed_abs, tag = 'smem constant byte address 0x4 - core index']
  #allocation1 [shape = 'u32[72,128]{1,0:T(1,128)}', space=vmem, size = 0x9000, scoped, tag = 'internal scratch']
  %s0 = inlined_call_operand.vmem [shape: f32[8,576], index: 0, kind: input, shape index: {}]
  %s1 = inlined_call_operand.vmem [shape: bf16[576,64], index: 1, kind: input, shape index: {}]
  %s2 = inlined_call_operand.vmem [shape: f32[1,64], index: 2, kind: input, shape index: {}]
  %s3 = inlined_call_operand.vmem [shape: f32[8,64], index: 3, kind: output, shape index: {}]
  %s4 = sld [smem:[#allocation0]]
  $region22: #{cnn_forward.6} parent=0
    _
  %s6 = ssub.s32 1, %s4
  %s7 = scalar_select 0, %s6, %s4
  // Predicated region
  $region2: #{cnn_forward.6} parent=0 // pred_check
    _
  $region3: #{cnn_forward.6} parent=0 // pred_check_branch
    %9 = sbr.rel (0) target = $region5
  $region4: #{cnn_forward.6} parent=0 // pred_region
    _
  $region5: #{cnn_forward.6} parent=0 // pred_fallthru
    _
  // Predicated region
  $region6: #{cnn_forward.6} parent=0 // pred_check
    _
  $region7: #{cnn_forward.6} parent=0 // pred_check_branch
    %11 = sbr.rel (0) target = $region9
  $region8: #{cnn_forward.6} parent=0 // pred_region
    _
  $region9: #{cnn_forward.6} parent=0 // pred_fallthru
    _
  // Predicated region
  $region10: #{cnn_forward.6} parent=0 // pred_check
    _
  $region11: #{cnn_forward.6} parent=0 // pred_check_branch
    %13 = sbr.rel (0) target = $region13
  $region12: #{cnn_forward.6} parent=0 // pred_region
    _
  $region13: #{cnn_forward.6} parent=0 // pred_fallthru
    _
  %v15 = vld [vmem:[%s0] sm:$0xff]
  %v16 = vld [vmem:[%s0 + $0x8] sm:$0xff]
  %v17 = vld [vmem:[%s0 + $0x10] sm:$0xff]
  %v18 = vld [vmem:[%s0 + $0x18] sm:$0xff]
  %v19 = vld [vmem:[%s0 + $0x20] sm:$0xff]
  %v20 = vpack.c.bf16 %v15, %v15
  %v21 = vpack.c.bf16 %v16, %v16
  %v22 = vpack.c.bf16 %v17, %v17
  %v23 = vpack.c.bf16 %v18, %v18
  %v24 = vpack.c.bf16 %v19, %v19
  %v25 = vld [vmem:[%s1] sm:$0xf]
  %v26 = vld [vmem:[%s1 + $0x4] sm:$0xf]
  %v27 = vld [vmem:[%s1 + $0x8] sm:$0xf]
  %v28 = vld [vmem:[%s1 + $0xc] sm:$0xf]
  %v29 = vld [vmem:[%s1 + $0x10] sm:$0xf]
  %v30 = vld [vmem:[%s1 + $0x14] sm:$0xf]
  %v31 = vld [vmem:[%s1 + $0x18] sm:$0xf]
  %v32 = vld [vmem:[%s1 + $0x1c] sm:$0xf]
  %v33 = vld [vmem:[%s1 + $0x20] sm:$0xf]
  %v34 = vld [vmem:[%s1 + $0x24] sm:$0xf]
  %v35 = vld [vmem:[%s1 + $0x28] sm:$0xf]
  %v36 = vld [vmem:[%s1 + $0x2c] sm:$0xf]
  %v37 = vld [vmem:[%s1 + $0x30] sm:$0xf]
  %v38 = vld [vmem:[%s1 + $0x34] sm:$0xf]
  %v39 = vld [vmem:[%s1 + $0x38] sm:$0xf]
  %v40 = vld [vmem:[%s1 + $0x3c] sm:$0xf]
  %v41 = vld [vmem:[%s1 + $0x40] sm:$0xf]
  %v42 = vld [vmem:[%s1 + $0x44] sm:$0xf]
  %v43 = vld [vmem:[%s1 + $0x48] sm:$0xf]
  %v44 = vld [vmem:[%s1 + $0x4c] sm:$0xf]
  %v45 = vld [vmem:[%s1 + $0x50] sm:$0xf]
  %v46 = vld [vmem:[%s1 + $0x54] sm:$0xf]
  %v47 = vld [vmem:[%s1 + $0x58] sm:$0xf]
  %v48 = vld [vmem:[%s1 + $0x5c] sm:$0xf]
  %v49 = vld [vmem:[%s1 + $0x60] sm:$0xf]
  %v50 = vld [vmem:[%s1 + $0x64] sm:$0xf]
  %v51 = vld [vmem:[%s1 + $0x68] sm:$0xf]
  %v52 = vld [vmem:[%s1 + $0x6c] sm:$0xf]
  %v53 = vld [vmem:[%s1 + $0x70] sm:$0xf]
  %v54 = vld [vmem:[%s1 + $0x74] sm:$0xf]
  %v55 = vld [vmem:[%s1 + $0x78] sm:$0xf]
  %v56 = vld [vmem:[%s1 + $0x7c] sm:$0xf]
  %v57 = vld [vmem:[%s1 + $0x80] sm:$0xf]
  %v58 = vld [vmem:[%s1 + $0x84] sm:$0xf]
  %v59 = vld [vmem:[%s1 + $0x88] sm:$0xf]
  %v60 = vld [vmem:[%s1 + $0x8c] sm:$0xf]
  %v61 = vld [vmem:[%s1 + $0x90] sm:$0xf]
  %v62 = vld [vmem:[%s1 + $0x94] sm:$0xf]
  %v63 = vld [vmem:[%s1 + $0x98] sm:$0xf]
  %v64 = vld [vmem:[%s1 + $0x9c] sm:$0xf]
  %v65 = vld [vmem:[%s1 + $0xa0] sm:$0xf]
  %v66 = vld [vmem:[%s1 + $0xa4] sm:$0xf]
  %v67 = vld [vmem:[%s1 + $0xa8] sm:$0xf]
  %v68 = vld [vmem:[%s1 + $0xac] sm:$0xf]
  %v69 = vld [vmem:[%s1 + $0xb0] sm:$0xf]
  %v70 = vld [vmem:[%s1 + $0xb4] sm:$0xf]
  %v71 = vld [vmem:[%s1 + $0xb8] sm:$0xf]
  %v72 = vld [vmem:[%s1 + $0xbc] sm:$0xf]
  %v73 = vld [vmem:[%s1 + $0xc0] sm:$0xf]
  %v74 = vld [vmem:[%s1 + $0xc4] sm:$0xf]
  %v75 = vld [vmem:[%s1 + $0xc8] sm:$0xf]
  %v76 = vld [vmem:[%s1 + $0xcc] sm:$0xf]
  %v77 = vld [vmem:[%s1 + $0xd0] sm:$0xf]
  %v78 = vld [vmem:[%s1 + $0xd4] sm:$0xf]
  %v79 = vld [vmem:[%s1 + $0xd8] sm:$0xf]
  %v80 = vld [vmem:[%s1 + $0xdc] sm:$0xf]
  %v81 = vld [vmem:[%s1 + $0xe0] sm:$0xf]
  %v82 = vld [vmem:[%s1 + $0xe4] sm:$0xf]
  %v83 = vld [vmem:[%s1 + $0xe8] sm:$0xf]
  %v84 = vld [vmem:[%s1 + $0xec] sm:$0xf]
  %v85 = vld [vmem:[%s1 + $0xf0] sm:$0xf]
  %v86 = vld [vmem:[%s1 + $0xf4] sm:$0xf]
  %v87 = vld [vmem:[%s1 + $0xf8] sm:$0xf]
  %v88 = vld [vmem:[%s1 + $0xfc] sm:$0xf]
  %v89 = vld [vmem:[%s1 + $0x100] sm:$0xf]
  %v90 = vld [vmem:[%s1 + $0x104] sm:$0xf]
  %v91 = vld [vmem:[%s1 + $0x108] sm:$0xf]
  %v92 = vld [vmem:[%s1 + $0x10c] sm:$0xf]
  %v93 = vld [vmem:[%s1 + $0x110] sm:$0xf]
  %v94 = vld [vmem:[%s1 + $0x114] sm:$0xf]
  %v95 = vld [vmem:[%s1 + $0x118] sm:$0xf]
  %v96 = vld [vmem:[%s1 + $0x11c] sm:$0xf]
  %v97 = vld [vmem:[%s2] sm:$0x1]
  %v99 = vperm.slane %v97, 0
  %v173 = vunpack.c.l.b16 %v25
  %v174 = vunpack.c.l.b16 %v26
  %v175 = vunpack.c.l.b16 %v27
  %v176 = vunpack.c.l.b16 %v28
  %v177 = vunpack.c.l.b16 %v29
  %v178 = vunpack.c.l.b16 %v30
  %v179 = vunpack.c.l.b16 %v31
  %v180 = vunpack.c.l.b16 %v32
  %v181 = vunpack.c.l.b16 %v33
  %v182 = vunpack.c.l.b16 %v34
  %v183 = vunpack.c.l.b16 %v35
  %v184 = vunpack.c.l.b16 %v36
  %v185 = vunpack.c.l.b16 %v37
  %v186 = vunpack.c.l.b16 %v38
  %v187 = vunpack.c.l.b16 %v39
  %v188 = vunpack.c.l.b16 %v40
  %v189 = vunpack.c.l.b16 %v41
  %v190 = vunpack.c.l.b16 %v42
  %v191 = vunpack.c.l.b16 %v43
  %v192 = vunpack.c.l.b16 %v44
  %v193 = vunpack.c.l.b16 %v45
  %v194 = vunpack.c.l.b16 %v46
  %v195 = vunpack.c.l.b16 %v47
  %v196 = vunpack.c.l.b16 %v48
  %v197 = vunpack.c.l.b16 %v49
  %v198 = vunpack.c.l.b16 %v50
  %v199 = vunpack.c.l.b16 %v51
  %v200 = vunpack.c.l.b16 %v52
  %v201 = vunpack.c.l.b16 %v53
  %v202 = vunpack.c.l.b16 %v54
  %v203 = vunpack.c.l.b16 %v55
  %v204 = vunpack.c.l.b16 %v56
  %v205 = vunpack.c.l.b16 %v57
  %v206 = vunpack.c.l.b16 %v58
  %v207 = vunpack.c.l.b16 %v59
  %v208 = vunpack.c.l.b16 %v60
  %v209 = vunpack.c.l.b16 %v61
  %v210 = vunpack.c.l.b16 %v62
  %v211 = vunpack.c.l.b16 %v63
  %v212 = vunpack.c.l.b16 %v64
  %v213 = vunpack.c.l.b16 %v65
  %v214 = vunpack.c.l.b16 %v66
  %v215 = vunpack.c.l.b16 %v67
  %v216 = vunpack.c.l.b16 %v68
  %v217 = vunpack.c.l.b16 %v69
  %v218 = vunpack.c.l.b16 %v70
  %v219 = vunpack.c.l.b16 %v71
  %v220 = vunpack.c.l.b16 %v72
  %v221 = vunpack.c.l.b16 %v73
  %v222 = vunpack.c.l.b16 %v74
  %v223 = vunpack.c.l.b16 %v75
  %v224 = vunpack.c.l.b16 %v76
  %v225 = vunpack.c.l.b16 %v77
  %v226 = vunpack.c.l.b16 %v78
  %v227 = vunpack.c.l.b16 %v79
  %v228 = vunpack.c.l.b16 %v80
  %v229 = vunpack.c.l.b16 %v81
  %v230 = vunpack.c.l.b16 %v82
  %v231 = vunpack.c.l.b16 %v83
  %v232 = vunpack.c.l.b16 %v84
  %v233 = vunpack.c.l.b16 %v85
  %v234 = vunpack.c.l.b16 %v86
  %v235 = vunpack.c.l.b16 %v87
  %v236 = vunpack.c.l.b16 %v88
  %v237 = vunpack.c.l.b16 %v89
  %v238 = vunpack.c.l.b16 %v90
  %v239 = vunpack.c.l.b16 %v91
  %v240 = vunpack.c.l.b16 %v92
  %v241 = vunpack.c.l.b16 %v93
  %v242 = vunpack.c.l.b16 %v94
  %v243 = vunpack.c.l.b16 %v95
  %v244 = vunpack.c.l.b16 %v96
  %v245 = vpack.c.b16 %v174, %v173
  %v246 = vpack.c.b16 %v176, %v175
  %v247 = vpack.c.b16 %v178, %v177
  %v248 = vpack.c.b16 %v180, %v179
  %v249 = vpack.c.b16 %v182, %v181
  %v250 = vpack.c.b16 %v184, %v183
  %v251 = vpack.c.b16 %v186, %v185
  %v252 = vpack.c.b16 %v188, %v187
  %v253 = vpack.c.b16 %v190, %v189
  %v254 = vpack.c.b16 %v192, %v191
  %v255 = vpack.c.b16 %v194, %v193
  %v256 = vpack.c.b16 %v196, %v195
  %v257 = vpack.c.b16 %v198, %v197
  %v258 = vpack.c.b16 %v200, %v199
  %v259 = vpack.c.b16 %v202, %v201
  %v260 = vpack.c.b16 %v204, %v203
  %v261 = vpack.c.b16 %v206, %v205
  %v262 = vpack.c.b16 %v208, %v207
  %v263 = vpack.c.b16 %v210, %v209
  %v264 = vpack.c.b16 %v212, %v211
  %v265 = vpack.c.b16 %v214, %v213
  %v266 = vpack.c.b16 %v216, %v215
  %v267 = vpack.c.b16 %v218, %v217
  %v268 = vpack.c.b16 %v220, %v219
  %v269 = vpack.c.b16 %v222, %v221
  %v270 = vpack.c.b16 %v224, %v223
  %v271 = vpack.c.b16 %v226, %v225
  %v272 = vpack.c.b16 %v228, %v227
  %v273 = vpack.c.b16 %v230, %v229
  %v274 = vpack.c.b16 %v232, %v231
  %v275 = vpack.c.b16 %v234, %v233
  %v276 = vpack.c.b16 %v236, %v235
  %v277 = vpack.c.b16 %v238, %v237
  %v278 = vpack.c.b16 %v240, %v239
  %v279 = vpack.c.b16 %v242, %v241
  %v280 = vpack.c.b16 %v244, %v243
  %vm317 = vcmask 523264
  %v319 = vsel %vm317, %v24, 0
  %321 = vmatpush.bf16.msra.mxu0 %v252
  %322 = vmatpush.bf16.msra.mxu0 %v251
  %323 = vmatpush.bf16.msra.mxu0 %v250
  %324 = vmatpush.bf16.msra.mxu0 %v249
  %325 = vmatpush.bf16.msra.mxu0 %v248
  %326 = vmatpush.bf16.msra.mxu0 %v247
  %327 = vmatpush.bf16.msra.mxu0 %v246
  %328 = vmatpush.bf16.msra.mxu0 %v245
  %329 = vmatmul.bf16.gmra.mxu0 %v20
  %v330 = vpop.f32.mrf.mxu0
  %v331 = vadd.f32 %v99, %v330
  %v332 = vpop.f32.mrf.mxu0
  %333 = vdwg.mxu0
  %334 = vmatpush.bf16.msra.mxu0 %v260
  %335 = vmatpush.bf16.msra.mxu0 %v259
  %336 = vmatpush.bf16.msra.mxu0 %v258
  %337 = vmatpush.bf16.msra.mxu0 %v257
  %338 = vmatpush.bf16.msra.mxu0 %v256
  %339 = vmatpush.bf16.msra.mxu0 %v255
  %340 = vmatpush.bf16.msra.mxu0 %v254
  %341 = vmatpush.bf16.msra.mxu0 %v253
  %342 = vmatmul.bf16.gmra.mxu0 %v21
  %v343 = vpop.f32.mrf.mxu0
  %v344 = vadd.f32 %v331, %v343
  %v345 = vpop.f32.mrf.mxu0
  %346 = vdwg.mxu0
  %347 = vmatpush.bf16.msra.mxu0 %v268
  %348 = vmatpush.bf16.msra.mxu0 %v267
  %349 = vmatpush.bf16.msra.mxu0 %v266
  %350 = vmatpush.bf16.msra.mxu0 %v265
  %351 = vmatpush.bf16.msra.mxu0 %v264
  %352 = vmatpush.bf16.msra.mxu0 %v263
  %353 = vmatpush.bf16.msra.mxu0 %v262
  %354 = vmatpush.bf16.msra.mxu0 %v261
  %355 = vmatmul.bf16.gmra.mxu0 %v22
  %v356 = vpop.f32.mrf.mxu0
  %v357 = vadd.f32 %v344, %v356
  %v358 = vpop.f32.mrf.mxu0
  %359 = vdwg.mxu0
  %360 = vmatpush.bf16.msra.mxu0 %v276
  %361 = vmatpush.bf16.msra.mxu0 %v275
  %362 = vmatpush.bf16.msra.mxu0 %v274
  %363 = vmatpush.bf16.msra.mxu0 %v273
  %364 = vmatpush.bf16.msra.mxu0 %v272
  %365 = vmatpush.bf16.msra.mxu0 %v271
  %366 = vmatpush.bf16.msra.mxu0 %v270
  %367 = vmatpush.bf16.msra.mxu0 %v269
  %368 = vmatmul.bf16.gmra.mxu0 %v23
  %v369 = vpop.f32.mrf.mxu0
  %v370 = vadd.f32 %v357, %v369
  %v371 = vpop.f32.mrf.mxu0
  %372 = vdwg.mxu0
  %373 = vmatpush.bf16.msra.mxu0 0
  %374 = vmatpush.bf16.msra.mxu0 0
  %375 = vmatpush.bf16.msra.mxu0 0
  %376 = vmatpush.bf16.msra.mxu0 0
  %377 = vmatpush.bf16.msra.mxu0 %v280
  %378 = vmatpush.bf16.msra.mxu0 %v279
  %379 = vmatpush.bf16.msra.mxu0 %v278
  %380 = vmatpush.bf16.msra.mxu0 %v277
  %381 = vmatmul.bf16.gmra.mxu0 %v319
  %v382 = vpop.f32.mrf.mxu0
  %v383 = vadd.f32 %v370, %v382
  %v384 = vpop.f32.mrf.mxu0
  %385 = vdwg.mxu0
  %v386 = vmax.f32 %v383, 0.0
  %387 = vst.msk [vmem:[%s3] sm:$0xff] %vm317, %v386
  // Predicated region
  $region14: #{cnn_forward.6} parent=0 // pred_check
    _
  $region15: #{cnn_forward.6} parent=0 // pred_check_branch
    %389 = sbr.rel (0) target = $region17
  $region16: #{cnn_forward.6} parent=0 // pred_region
    _
  $region17: #{cnn_forward.6} parent=0 // pred_fallthru
    _
  // Predicated region
  $region18: #{cnn_forward.6} parent=0 // pred_check
    _
  $region19: #{cnn_forward.6} parent=0 // pred_check_branch
    %391 = sbr.rel (0) target = $region21
  $region20: #{cnn_forward.6} parent=0 // pred_region
    _
  $region21: #{cnn_forward.6} parent=0 // pred_fallthru
    _

// kernel: cnn_forward.7
$region0: #{cnn_forward.7}
  #allocation0 [shape = 'u32[]', space=smem, size = 0x4, offset = 0x4, fixed_abs, tag = 'smem constant byte address 0x4 - core index']
  #allocation1 [shape = 'u32[72,128]{1,0:T(1,128)}', space=vmem, size = 0x9000, scoped, tag = 'internal scratch']
  %s0 = inlined_call_operand.vmem [shape: f32[8,64], index: 0, kind: input, shape index: {}]
  %s1 = inlined_call_operand.vmem [shape: bf16[64,512], index: 1, kind: input, shape index: {}]
  %s2 = inlined_call_operand.vmem [shape: f32[1,512], index: 2, kind: input, shape index: {}]
  %s3 = inlined_call_operand.vmem [shape: bf16[512,128], index: 3, kind: input, shape index: {}]
  %s4 = inlined_call_operand.vmem [shape: f32[1,128], index: 4, kind: input, shape index: {}]
  %s5 = inlined_call_operand.vmem [shape: f32[8,128], index: 5, kind: output, shape index: {}]
  %s6 = sld [smem:[#allocation0]]
  $region30: #{cnn_forward.7} parent=0
    _
  %s8 = ssub.s32 1, %s6
  %s9 = scalar_select 0, %s8, %s6
  // Predicated region
  $region2: #{cnn_forward.7} parent=0 // pred_check
    _
  $region3: #{cnn_forward.7} parent=0 // pred_check_branch
    %11 = sbr.rel (0) target = $region5
  $region4: #{cnn_forward.7} parent=0 // pred_region
    _
  $region5: #{cnn_forward.7} parent=0 // pred_fallthru
    _
  // Predicated region
  $region6: #{cnn_forward.7} parent=0 // pred_check
    _
  $region7: #{cnn_forward.7} parent=0 // pred_check_branch
    %13 = sbr.rel (0) target = $region9
  $region8: #{cnn_forward.7} parent=0 // pred_region
    _
  $region9: #{cnn_forward.7} parent=0 // pred_fallthru
    _
  // Predicated region
  $region10: #{cnn_forward.7} parent=0 // pred_check
    _
  $region11: #{cnn_forward.7} parent=0 // pred_check_branch
    %15 = sbr.rel (0) target = $region13
  $region12: #{cnn_forward.7} parent=0 // pred_region
    _
  $region13: #{cnn_forward.7} parent=0 // pred_fallthru
    _
  // Predicated region
  $region14: #{cnn_forward.7} parent=0 // pred_check
    _
  $region15: #{cnn_forward.7} parent=0 // pred_check_branch
    %17 = sbr.rel (0) target = $region17
  $region16: #{cnn_forward.7} parent=0 // pred_region
    _
  $region17: #{cnn_forward.7} parent=0 // pred_fallthru
    _
  // Predicated region
  $region18: #{cnn_forward.7} parent=0 // pred_check
    _
  $region19: #{cnn_forward.7} parent=0 // pred_check_branch
    %19 = sbr.rel (0) target = $region21
  $region20: #{cnn_forward.7} parent=0 // pred_region
    _
  $region21: #{cnn_forward.7} parent=0 // pred_fallthru
    _
  %v21 = vld [vmem:[%s0] sm:$0xff]
  %v22 = vpack.c.bf16 %v21, %v21
  %v23 = vld [vmem:[%s1] sm:$0xff]
  %v24 = vld [vmem:[%s1 + $0x8] sm:$0xff]
  %v25 = vld [vmem:[%s1 + $0x10] sm:$0xff]
  %v26 = vld [vmem:[%s1 + $0x18] sm:$0xff]
  %v27 = vld [vmem:[%s1 + $0x20] sm:$0xff]
  %v28 = vld [vmem:[%s1 + $0x28] sm:$0xff]
  %v29 = vld [vmem:[%s1 + $0x30] sm:$0xff]
  %v30 = vld [vmem:[%s1 + $0x38] sm:$0xff]
  %v31 = vld [vmem:[%s1 + $0x40] sm:$0xff]
  %v32 = vld [vmem:[%s1 + $0x48] sm:$0xff]
  %v33 = vld [vmem:[%s1 + $0x50] sm:$0xff]
  %v34 = vld [vmem:[%s1 + $0x58] sm:$0xff]
  %v35 = vld [vmem:[%s1 + $0x60] sm:$0xff]
  %v36 = vld [vmem:[%s1 + $0x68] sm:$0xff]
  %v37 = vld [vmem:[%s1 + $0x70] sm:$0xff]
  %v38 = vld [vmem:[%s1 + $0x78] sm:$0xff]
  %v39 = vld [vmem:[%s2] sm:$0xf]
  %v41 = vperm.slane %v39, 0
  %v42 = vperm.slane %v39, 1
  %v43 = vperm.slane %v39, 2
  %v44 = vperm.slane %v39, 3
  %v65 = vunpack.c.l.b16 %v23
  %v66 = vunpack.c.h.b16 %v23
  %v67 = vunpack.c.l.b16 %v24
  %v68 = vunpack.c.h.b16 %v24
  %v69 = vunpack.c.l.b16 %v25
  %v70 = vunpack.c.h.b16 %v25
  %v71 = vunpack.c.l.b16 %v26
  %v72 = vunpack.c.h.b16 %v26
  %v73 = vunpack.c.l.b16 %v27
  %v74 = vunpack.c.h.b16 %v27
  %v75 = vunpack.c.l.b16 %v28
  %v76 = vunpack.c.h.b16 %v28
  %v77 = vunpack.c.l.b16 %v29
  %v78 = vunpack.c.h.b16 %v29
  %v79 = vunpack.c.l.b16 %v30
  %v80 = vunpack.c.h.b16 %v30
  %v81 = vunpack.c.l.b16 %v31
  %v82 = vunpack.c.h.b16 %v31
  %v83 = vunpack.c.l.b16 %v32
  %v84 = vunpack.c.h.b16 %v32
  %v85 = vunpack.c.l.b16 %v33
  %v86 = vunpack.c.h.b16 %v33
  %v87 = vunpack.c.l.b16 %v34
  %v88 = vunpack.c.h.b16 %v34
  %v89 = vunpack.c.l.b16 %v35
  %v90 = vunpack.c.h.b16 %v35
  %v91 = vunpack.c.l.b16 %v36
  %v92 = vunpack.c.h.b16 %v36
  %v93 = vunpack.c.l.b16 %v37
  %v94 = vunpack.c.h.b16 %v37
  %v95 = vunpack.c.l.b16 %v38
  %v96 = vunpack.c.h.b16 %v38
  %v97 = vpack.c.b16 %v69, %v65
  %v98 = vpack.c.b16 %v70, %v66
  %v99 = vpack.c.b16 %v71, %v67
  %v100 = vpack.c.b16 %v72, %v68
  %v101 = vpack.c.b16 %v77, %v73
  %v102 = vpack.c.b16 %v78, %v74
  %v103 = vpack.c.b16 %v79, %v75
  %v104 = vpack.c.b16 %v80, %v76
  %v105 = vpack.c.b16 %v85, %v81
  %v106 = vpack.c.b16 %v86, %v82
  %v107 = vpack.c.b16 %v87, %v83
  %v108 = vpack.c.b16 %v88, %v84
  %v109 = vpack.c.b16 %v93, %v89
  %v110 = vpack.c.b16 %v94, %v90
  %v111 = vpack.c.b16 %v95, %v91
  %v112 = vpack.c.b16 %v96, %v92
  %vm129 = vcmask 523264
  %v131 = vsel %vm129, %v22, 0
  %133 = vmatpush.bf16.msra.mxu0 0
  %134 = vmatpush.bf16.msra.mxu0 0
  %135 = vmatpush.bf16.msra.mxu0 0
  %136 = vmatpush.bf16.msra.mxu0 0
  %137 = vmatpush.bf16.msra.mxu0 %v109
  %138 = vmatpush.bf16.msra.mxu0 %v105
  %139 = vmatpush.bf16.msra.mxu0 %v101
  %140 = vmatpush.bf16.msra.mxu0 %v97
  %141 = vmatmul.bf16.gmra.mxu0 %v131
  %v142 = vpop.f32.mrf.mxu0
  %v143 = vadd.f32 %v41, %v142
  %v144 = vpop.f32.mrf.mxu0
  %145 = vdwg.mxu0
  %146 = vmatpush.bf16.msra.mxu0 0
  %147 = vmatpush.bf16.msra.mxu0 0
  %148 = vmatpush.bf16.msra.mxu0 0
  %149 = vmatpush.bf16.msra.mxu0 0
  %150 = vmatpush.bf16.msra.mxu0 %v110
  %151 = vmatpush.bf16.msra.mxu0 %v106
  %152 = vmatpush.bf16.msra.mxu0 %v102
  %153 = vmatpush.bf16.msra.mxu0 %v98
  %154 = vmatmul.bf16.gmra.mxu0 %v131
  %v155 = vpop.f32.mrf.mxu0
  %v156 = vadd.f32 %v42, %v155
  %v157 = vpop.f32.mrf.mxu0
  %158 = vdwg.mxu0
  %159 = vmatpush.bf16.msra.mxu0 0
  %160 = vmatpush.bf16.msra.mxu0 0
  %161 = vmatpush.bf16.msra.mxu0 0
  %162 = vmatpush.bf16.msra.mxu0 0
  %163 = vmatpush.bf16.msra.mxu0 %v111
  %164 = vmatpush.bf16.msra.mxu0 %v107
  %165 = vmatpush.bf16.msra.mxu0 %v103
  %166 = vmatpush.bf16.msra.mxu0 %v99
  %167 = vmatmul.bf16.gmra.mxu0 %v131
  %v168 = vpop.f32.mrf.mxu0
  %v169 = vadd.f32 %v43, %v168
  %v170 = vpop.f32.mrf.mxu0
  %171 = vdwg.mxu0
  %172 = vmatpush.bf16.msra.mxu0 0
  %173 = vmatpush.bf16.msra.mxu0 0
  %174 = vmatpush.bf16.msra.mxu0 0
  %175 = vmatpush.bf16.msra.mxu0 0
  %176 = vmatpush.bf16.msra.mxu0 %v112
  %177 = vmatpush.bf16.msra.mxu0 %v108
  %178 = vmatpush.bf16.msra.mxu0 %v104
  %179 = vmatpush.bf16.msra.mxu0 %v100
  %180 = vmatmul.bf16.gmra.mxu0 %v131
  %v181 = vpop.f32.mrf.mxu0
  %v182 = vadd.f32 %v44, %v181
  %v183 = vpop.f32.mrf.mxu0
  %184 = vdwg.mxu0
  %v185 = vmax.f32 %v143, 0.0
  %v186 = vmax.f32 %v156, 0.0
  %v187 = vmax.f32 %v169, 0.0
  %v188 = vmax.f32 %v182, 0.0
  %v189 = vpack.c.bf16 %v185, %v185
  %v190 = vpack.c.bf16 %v186, %v186
  %v191 = vpack.c.bf16 %v187, %v187
  %v192 = vpack.c.bf16 %v188, %v188
  %v193 = vld [vmem:[%s3] sm:$0xf]
  %v194 = vld [vmem:[%s3 + $0x4] sm:$0xf]
  %v195 = vld [vmem:[%s3 + $0x8] sm:$0xf]
  %v196 = vld [vmem:[%s3 + $0xc] sm:$0xf]
  %v197 = vld [vmem:[%s3 + $0x10] sm:$0xf]
  %v198 = vld [vmem:[%s3 + $0x14] sm:$0xf]
  %v199 = vld [vmem:[%s3 + $0x18] sm:$0xf]
  %v200 = vld [vmem:[%s3 + $0x1c] sm:$0xf]
  %v201 = vld [vmem:[%s3 + $0x20] sm:$0xf]
  %v202 = vld [vmem:[%s3 + $0x24] sm:$0xf]
  %v203 = vld [vmem:[%s3 + $0x28] sm:$0xf]
  %v204 = vld [vmem:[%s3 + $0x2c] sm:$0xf]
  %v205 = vld [vmem:[%s3 + $0x30] sm:$0xf]
  %v206 = vld [vmem:[%s3 + $0x34] sm:$0xf]
  %v207 = vld [vmem:[%s3 + $0x38] sm:$0xf]
  %v208 = vld [vmem:[%s3 + $0x3c] sm:$0xf]
  %v209 = vld [vmem:[%s3 + $0x40] sm:$0xf]
  %v210 = vld [vmem:[%s3 + $0x44] sm:$0xf]
  %v211 = vld [vmem:[%s3 + $0x48] sm:$0xf]
  %v212 = vld [vmem:[%s3 + $0x4c] sm:$0xf]
  %v213 = vld [vmem:[%s3 + $0x50] sm:$0xf]
  %v214 = vld [vmem:[%s3 + $0x54] sm:$0xf]
  %v215 = vld [vmem:[%s3 + $0x58] sm:$0xf]
  %v216 = vld [vmem:[%s3 + $0x5c] sm:$0xf]
  %v217 = vld [vmem:[%s3 + $0x60] sm:$0xf]
  %v218 = vld [vmem:[%s3 + $0x64] sm:$0xf]
  %v219 = vld [vmem:[%s3 + $0x68] sm:$0xf]
  %v220 = vld [vmem:[%s3 + $0x6c] sm:$0xf]
  %v221 = vld [vmem:[%s3 + $0x70] sm:$0xf]
  %v222 = vld [vmem:[%s3 + $0x74] sm:$0xf]
  %v223 = vld [vmem:[%s3 + $0x78] sm:$0xf]
  %v224 = vld [vmem:[%s3 + $0x7c] sm:$0xf]
  %v225 = vld [vmem:[%s3 + $0x80] sm:$0xf]
  %v226 = vld [vmem:[%s3 + $0x84] sm:$0xf]
  %v227 = vld [vmem:[%s3 + $0x88] sm:$0xf]
  %v228 = vld [vmem:[%s3 + $0x8c] sm:$0xf]
  %v229 = vld [vmem:[%s3 + $0x90] sm:$0xf]
  %v230 = vld [vmem:[%s3 + $0x94] sm:$0xf]
  %v231 = vld [vmem:[%s3 + $0x98] sm:$0xf]
  %v232 = vld [vmem:[%s3 + $0x9c] sm:$0xf]
  %v233 = vld [vmem:[%s3 + $0xa0] sm:$0xf]
  %v234 = vld [vmem:[%s3 + $0xa4] sm:$0xf]
  %v235 = vld [vmem:[%s3 + $0xa8] sm:$0xf]
  %v236 = vld [vmem:[%s3 + $0xac] sm:$0xf]
  %v237 = vld [vmem:[%s3 + $0xb0] sm:$0xf]
  %v238 = vld [vmem:[%s3 + $0xb4] sm:$0xf]
  %v239 = vld [vmem:[%s3 + $0xb8] sm:$0xf]
  %v240 = vld [vmem:[%s3 + $0xbc] sm:$0xf]
  %v241 = vld [vmem:[%s3 + $0xc0] sm:$0xf]
  %v242 = vld [vmem:[%s3 + $0xc4] sm:$0xf]
  %v243 = vld [vmem:[%s3 + $0xc8] sm:$0xf]
  %v244 = vld [vmem:[%s3 + $0xcc] sm:$0xf]
  %v245 = vld [vmem:[%s3 + $0xd0] sm:$0xf]
  %v246 = vld [vmem:[%s3 + $0xd4] sm:$0xf]
  %v247 = vld [vmem:[%s3 + $0xd8] sm:$0xf]
  %v248 = vld [vmem:[%s3 + $0xdc] sm:$0xf]
  %v249 = vld [vmem:[%s3 + $0xe0] sm:$0xf]
  %v250 = vld [vmem:[%s3 + $0xe4] sm:$0xf]
  %v251 = vld [vmem:[%s3 + $0xe8] sm:$0xf]
  %v252 = vld [vmem:[%s3 + $0xec] sm:$0xf]
  %v253 = vld [vmem:[%s3 + $0xf0] sm:$0xf]
  %v254 = vld [vmem:[%s3 + $0xf4] sm:$0xf]
  %v255 = vld [vmem:[%s3 + $0xf8] sm:$0xf]
  %v256 = vld [vmem:[%s3 + $0xfc] sm:$0xf]
  %v257 = vld [vmem:[%s4] sm:$0x1]
  %v259 = vperm.slane %v257, 0
  %v325 = vunpack.c.l.b16 %v193
  %v326 = vunpack.c.l.b16 %v194
  %v327 = vunpack.c.l.b16 %v195
  %v328 = vunpack.c.l.b16 %v196
  %v329 = vunpack.c.l.b16 %v197
  %v330 = vunpack.c.l.b16 %v198
  %v331 = vunpack.c.l.b16 %v199
  %v332 = vunpack.c.l.b16 %v200
  %v333 = vunpack.c.l.b16 %v201
  %v334 = vunpack.c.l.b16 %v202
  %v335 = vunpack.c.l.b16 %v203
  %v336 = vunpack.c.l.b16 %v204
  %v337 = vunpack.c.l.b16 %v205
  %v338 = vunpack.c.l.b16 %v206
  %v339 = vunpack.c.l.b16 %v207
  %v340 = vunpack.c.l.b16 %v208
  %v341 = vunpack.c.l.b16 %v209
  %v342 = vunpack.c.l.b16 %v210
  %v343 = vunpack.c.l.b16 %v211
  %v344 = vunpack.c.l.b16 %v212
  %v345 = vunpack.c.l.b16 %v213
  %v346 = vunpack.c.l.b16 %v214
  %v347 = vunpack.c.l.b16 %v215
  %v348 = vunpack.c.l.b16 %v216
  %v349 = vunpack.c.l.b16 %v217
  %v350 = vunpack.c.l.b16 %v218
  %v351 = vunpack.c.l.b16 %v219
  %v352 = vunpack.c.l.b16 %v220
  %v353 = vunpack.c.l.b16 %v221
  %v354 = vunpack.c.l.b16 %v222
  %v355 = vunpack.c.l.b16 %v223
  %v356 = vunpack.c.l.b16 %v224
  %v357 = vunpack.c.l.b16 %v225
  %v358 = vunpack.c.l.b16 %v226
  %v359 = vunpack.c.l.b16 %v227
  %v360 = vunpack.c.l.b16 %v228
  %v361 = vunpack.c.l.b16 %v229
  %v362 = vunpack.c.l.b16 %v230
  %v363 = vunpack.c.l.b16 %v231
  %v364 = vunpack.c.l.b16 %v232
  %v365 = vunpack.c.l.b16 %v233
  %v366 = vunpack.c.l.b16 %v234
  %v367 = vunpack.c.l.b16 %v235
  %v368 = vunpack.c.l.b16 %v236
  %v369 = vunpack.c.l.b16 %v237
  %v370 = vunpack.c.l.b16 %v238
  %v371 = vunpack.c.l.b16 %v239
  %v372 = vunpack.c.l.b16 %v240
  %v373 = vunpack.c.l.b16 %v241
  %v374 = vunpack.c.l.b16 %v242
  %v375 = vunpack.c.l.b16 %v243
  %v376 = vunpack.c.l.b16 %v244
  %v377 = vunpack.c.l.b16 %v245
  %v378 = vunpack.c.l.b16 %v246
  %v379 = vunpack.c.l.b16 %v247
  %v380 = vunpack.c.l.b16 %v248
  %v381 = vunpack.c.l.b16 %v249
  %v382 = vunpack.c.l.b16 %v250
  %v383 = vunpack.c.l.b16 %v251
  %v384 = vunpack.c.l.b16 %v252
  %v385 = vunpack.c.l.b16 %v253
  %v386 = vunpack.c.l.b16 %v254
  %v387 = vunpack.c.l.b16 %v255
  %v388 = vunpack.c.l.b16 %v256
  %v389 = vpack.c.b16 %v326, %v325
  %v390 = vpack.c.b16 %v328, %v327
  %v391 = vpack.c.b16 %v330, %v329
  %v392 = vpack.c.b16 %v332, %v331
  %v393 = vpack.c.b16 %v334, %v333
  %v394 = vpack.c.b16 %v336, %v335
  %v395 = vpack.c.b16 %v338, %v337
  %v396 = vpack.c.b16 %v340, %v339
  %v397 = vpack.c.b16 %v342, %v341
  %v398 = vpack.c.b16 %v344, %v343
  %v399 = vpack.c.b16 %v346, %v345
  %v400 = vpack.c.b16 %v348, %v347
  %v401 = vpack.c.b16 %v350, %v349
  %v402 = vpack.c.b16 %v352, %v351
  %v403 = vpack.c.b16 %v354, %v353
  %v404 = vpack.c.b16 %v356, %v355
  %v405 = vpack.c.b16 %v358, %v357
  %v406 = vpack.c.b16 %v360, %v359
  %v407 = vpack.c.b16 %v362, %v361
  %v408 = vpack.c.b16 %v364, %v363
  %v409 = vpack.c.b16 %v366, %v365
  %v410 = vpack.c.b16 %v368, %v367
  %v411 = vpack.c.b16 %v370, %v369
  %v412 = vpack.c.b16 %v372, %v371
  %v413 = vpack.c.b16 %v374, %v373
  %v414 = vpack.c.b16 %v376, %v375
  %v415 = vpack.c.b16 %v378, %v377
  %v416 = vpack.c.b16 %v380, %v379
  %v417 = vpack.c.b16 %v382, %v381
  %v418 = vpack.c.b16 %v384, %v383
  %v419 = vpack.c.b16 %v386, %v385
  %v420 = vpack.c.b16 %v388, %v387
  %453 = vmatpush.bf16.msra.mxu0 %v396
  %454 = vmatpush.bf16.msra.mxu0 %v395
  %455 = vmatpush.bf16.msra.mxu0 %v394
  %456 = vmatpush.bf16.msra.mxu0 %v393
  %457 = vmatpush.bf16.msra.mxu0 %v392
  %458 = vmatpush.bf16.msra.mxu0 %v391
  %459 = vmatpush.bf16.msra.mxu0 %v390
  %460 = vmatpush.bf16.msra.mxu0 %v389
  %461 = vmatmul.bf16.gmra.mxu0 %v189
  %v462 = vpop.f32.mrf.mxu0
  %v463 = vadd.f32 %v259, %v462
  %v464 = vpop.f32.mrf.mxu0
  %465 = vdwg.mxu0
  %466 = vmatpush.bf16.msra.mxu0 %v404
  %467 = vmatpush.bf16.msra.mxu0 %v403
  %468 = vmatpush.bf16.msra.mxu0 %v402
  %469 = vmatpush.bf16.msra.mxu0 %v401
  %470 = vmatpush.bf16.msra.mxu0 %v400
  %471 = vmatpush.bf16.msra.mxu0 %v399
  %472 = vmatpush.bf16.msra.mxu0 %v398
  %473 = vmatpush.bf16.msra.mxu0 %v397
  %474 = vmatmul.bf16.gmra.mxu0 %v190
  %v475 = vpop.f32.mrf.mxu0
  %v476 = vadd.f32 %v463, %v475
  %v477 = vpop.f32.mrf.mxu0
  %478 = vdwg.mxu0
  %479 = vmatpush.bf16.msra.mxu0 %v412
  %480 = vmatpush.bf16.msra.mxu0 %v411
  %481 = vmatpush.bf16.msra.mxu0 %v410
  %482 = vmatpush.bf16.msra.mxu0 %v409
  %483 = vmatpush.bf16.msra.mxu0 %v408
  %484 = vmatpush.bf16.msra.mxu0 %v407
  %485 = vmatpush.bf16.msra.mxu0 %v406
  %486 = vmatpush.bf16.msra.mxu0 %v405
  %487 = vmatmul.bf16.gmra.mxu0 %v191
  %v488 = vpop.f32.mrf.mxu0
  %v489 = vadd.f32 %v476, %v488
  %v490 = vpop.f32.mrf.mxu0
  %491 = vdwg.mxu0
  %492 = vmatpush.bf16.msra.mxu0 %v420
  %493 = vmatpush.bf16.msra.mxu0 %v419
  %494 = vmatpush.bf16.msra.mxu0 %v418
  %495 = vmatpush.bf16.msra.mxu0 %v417
  %496 = vmatpush.bf16.msra.mxu0 %v416
  %497 = vmatpush.bf16.msra.mxu0 %v415
  %498 = vmatpush.bf16.msra.mxu0 %v414
  %499 = vmatpush.bf16.msra.mxu0 %v413
  %500 = vmatmul.bf16.gmra.mxu0 %v192
  %v501 = vpop.f32.mrf.mxu0
  %v502 = vadd.f32 %v489, %v501
  %v503 = vpop.f32.mrf.mxu0
  %504 = vdwg.mxu0
  %505 = vst [vmem:[%s5] sm:$0xff] %v502
  // Predicated region
  $region22: #{cnn_forward.7} parent=0 // pred_check
    _
  $region23: #{cnn_forward.7} parent=0 // pred_check_branch
    %507 = sbr.rel (0) target = $region25
  $region24: #{cnn_forward.7} parent=0 // pred_region
    _
  $region25: #{cnn_forward.7} parent=0 // pred_fallthru
    _
  // Predicated region
  $region26: #{cnn_forward.7} parent=0 // pred_check
    _
  $region27: #{cnn_forward.7} parent=0 // pred_check_branch
    %509 = sbr.rel (0) target = $region29
  $region28: #{cnn_forward.7} parent=0 // pred_region
    _
  $region29: #{cnn_forward.7} parent=0 // pred_fallthru
    _

</llo_original>
